<compile_context>
chip_gen: v7x
topology: tpu7x:2x2x1
jax: 0.10.0
libtpu: 0.0.40
codegen_flags: <defaults>
</compile_context>

<pallas_src>
import functools
from typing import Sequence, Tuple

import jax
import jax.numpy as jnp
from jax.experimental import pallas as pl
from jax.experimental.pallas import tpu as pltpu


LANE = 128          # TPU lane width (last-dim alignment for padded dims)
BATCH_ALIGN = 16    # bf16 sublane packing -> batch tile must be a 16-multiple
NEG_PAD = -1e30     # large negative *finite* fill for padded output-class lanes


def _round_up(n: int, m: int) -> int:
    return ((n + m - 1) // m) * m


# ----------------------------------------------------------------------------
# Config glue (pure Python; mirrors PiecewiseLinearDiscreteFn from the module).
# ----------------------------------------------------------------------------
class PiecewiseLinearDiscreteFn:
    def __init__(self, pieces: Sequence[Tuple[int, float]]):
        assert pieces == sorted(pieces)
        self.pieces = pieces

    def __call__(self, x: int) -> int:
        for i, (x_a, y_a) in enumerate(self.pieces[:-1]):
            x_b, _ = self.pieces[i + 1]
            if x_a <= x <= x_b:
                return int(y_a)
        return int(self.pieces[-1][1])

    @staticmethod
    def from_string(configuration: str) -> "PiecewiseLinearDiscreteFn":
        if isinstance(configuration, float):
            return PiecewiseLinearDiscreteFn([(0, configuration)])
        parts = configuration.split(",")
        if len(parts) == 1:
            return PiecewiseLinearDiscreteFn([(0, float(configuration))])
        split = [s.split(":") for s in parts]
        pieces = [(int(t), float(v)) for t, v in split]
        return PiecewiseLinearDiscreteFn(pieces)


# ----------------------------------------------------------------------------
# One-time parameter preparation (hoisted out of the per-call path).
# ----------------------------------------------------------------------------
def prepare_db_nn_params(weights, biases, *, use_bf16=True):
    """Pad / cast Linear parameters once; reuse across forward calls.

    weights[i]: (d_in_i, d_out_i) pre-transposed Linear weights (f32).
    biases[i]:  (1, d_out_i) (f32).

    Only output dims are padded to 128 lanes; the model input dim is left
    unpadded (the x block's last dim equals the full array dim, which is a
    legal BlockSpec and avoids amplifying the x HBM reads).  Padded bias lanes
    of the *last* layer are filled with NEG_PAD so log-softmax ignores them
    without any in-kernel masking; intermediate padded lanes stay exactly 0.
    """
    num_linear = len(weights)
    in_dim = weights[0].shape[0]
    out_dim = weights[-1].shape[1]

    padded_w, padded_b = [], []
    prev_p = in_dim                       # layer-0 K is the unpadded in_dim
    for i, (w, b) in enumerate(zip(weights, biases)):
        d_in, d_out = w.shape
        d_out_p = _round_up(d_out, LANE)
        wp = jnp.zeros((prev_p, d_out_p), jnp.float32).at[:d_in, :d_out].set(
            jnp.asarray(w, jnp.float32))
        fill = NEG_PAD if (i == num_linear - 1 and d_out_p != d_out) else 0.0
        bp = jnp.full((1, d_out_p), fill, jnp.float32).at[:, :d_out].set(
            jnp.asarray(b, jnp.float32).reshape(1, d_out))
        if use_bf16:
            wp = wp.astype(jnp.bfloat16)  # halves weight DMA / resident VMEM
        padded_w.append(wp)
        padded_b.append(bp)
        prev_p = d_out_p

    return dict(
        weights=tuple(padded_w),
        biases=tuple(padded_b),
        in_dim=in_dim,
        out_dim=out_dim,
        out_dim_padded=prev_p,
        num_linear=num_linear,
        use_bf16=use_bf16,
    )


# ----------------------------------------------------------------------------
# Pallas kernel: full MLP (chain of Linear + ReLU) followed by log-softmax.
# Operates on one (TB, *) batch tile per grid step; weights stay resident.
# ----------------------------------------------------------------------------
def _mlp_logsoftmax_kernel(*refs, num_linear, use_bf16):
    # refs = (x_ref, w0, b0, w1, b1, ..., wL, bL, out_ref)
    x_ref = refs[0]
    o_ref = refs[-1]
    wb_refs = refs[1:-1]

    h = x_ref[...]                        # already bf16 when use_bf16
    if not use_bf16:
        h = h.astype(jnp.float32)
    for i in range(num_linear):
        w = wb_refs[2 * i][...]
        b = wb_refs[2 * i + 1][...]       # f32
        lhs = h if i == 0 else (h.astype(jnp.bfloat16) if use_bf16 else h)
        # MXU matmul with f32 accumulation; bias / ReLU / softmax stay f32 (VPU).
        h = jnp.dot(lhs, w, preferred_element_type=jnp.float32) + b
        if i < num_linear - 1:
            h = jnp.maximum(h, 0.0)

    # Numerically stable log-softmax over the class dim (dim=1).  Padded class
    # lanes carry the NEG_PAD bias, so exp() underflows to 0 and they never
    # affect max / sum; all stored values remain finite.
    m = jnp.max(h, axis=-1, keepdims=True)
    shifted = h - m
    lse = jnp.log(jnp.sum(jnp.exp(shifted), axis=-1, keepdims=True))
    o_ref[...] = (shifted - lse).astype(o_ref.dtype)


def db_nn_classifier_forward(x, params, *, block_batch=256):
    """Forward pass of _DbNNClassifier (ffn + LogSoftmax).

    x: (batch, in_dim).  params: output of prepare_db_nn_params.
    Returns (batch, out_dim) f32 log-probabilities.
    """
    padded_w = params["weights"]
    padded_b = params["biases"]
    in_dim = params["in_dim"]
    out_dim = params["out_dim"]
    out_p = params["out_dim_padded"]
    num_linear = params["num_linear"]
    use_bf16 = params["use_bf16"]

    batch = x.shape[0]
    assert x.shape[1] == in_dim

    # Batch tile: multiple of 16 (bf16 sublane packing); default 256 rows so
    # every MXU pass is well fed.  Sweep block_batch in {128, 256, 512}.
    tb = _round_up(min(block_batch, _round_up(batch, BATCH_ALIGN)), BATCH_ALIGN)
    batch_p = _round_up(batch, tb)

    x_itemsize = 2 if use_bf16 else 4
    x_dtype = jnp.bfloat16 if use_bf16 else jnp.float32
    xp = x if x.dtype == x_dtype else x.astype(x_dtype)
    if batch_p != batch:                  # skip the pad when batch % tb == 0
        xp = jnp.zeros((batch_p, in_dim), x_dtype).at[:batch].set(xp)

    flat_params = []
    for w, b in zip(padded_w, padded_b):
        flat_params.append(w)
        flat_params.append(b)

    grid = (batch_p // tb,)
    # x last dim == full array dim (no 128-lane pad) -> legal block spec.
    x_spec = pl.BlockSpec((tb, in_dim), lambda i: (i, 0))
    # Lane-dense output store (out_p is a multiple of 128) -> unmasked vst.
    o_spec = pl.BlockSpec((tb, out_p), lambda i: (i, 0))

    wb_bytes = sum(a.size * a.dtype.itemsize for a in flat_params)
    x_tile_bytes = tb * in_dim * x_itemsize
    o_tile_bytes = tb * out_p * 4

    flops = sum(2 * batch_p * w.shape[0] * w.shape[1] for w in padded_w)
    cost = pl.CostEstimate(
        flops=int(flops),
        transcendentals=int(batch_p * out_p + batch_p),
        bytes_accessed=int(batch_p * in_dim * x_itemsize
                           + wb_bytes + batch_p * out_p * 4),
    )

    kernel = functools.partial(
        _mlp_logsoftmax_kernel, num_linear=num_linear, use_bf16=use_bf16)

    def _wb_specs(single_buffer):
        specs = []
        for a in flat_params:
            # Constant index_map -> stays VMEM-resident, DMA'd only once.
            if single_buffer:
                specs.append(pl.BlockSpec(a.shape, lambda i: (0, 0),
                                          pipeline_mode=pl.Buffered(1)))
            else:
                specs.append(pl.BlockSpec(a.shape, lambda i: (0, 0)))
        return specs

    def _call(single_buffer):
        wbuf = 1 if single_buffer else 2
        needed = 2 * x_tile_bytes + 2 * o_tile_bytes + wbuf * wb_bytes
        vmem_limit = int(min(max(needed * 5 // 4 + (2 << 20), 16 << 20),
                             128 << 20))
        return pl.pallas_call(
            kernel,
            out_shape=jax.ShapeDtypeStruct((batch_p, out_p), jnp.float32),
            grid=grid,
            in_specs=[x_spec] + _wb_specs(single_buffer),
            out_specs=o_spec,
            compiler_params=pltpu.CompilerParams(
                dimension_semantics=("parallel",),   # megacore sharding on v7x
                vmem_limit_bytes=vmem_limit,
            ),
            cost_estimate=cost,
        )(xp, *flat_params)

    try:
        out_padded = _call(True)      # single-buffered resident weights
    except Exception:
        out_padded = _call(False)     # fallback: default double buffering

    return out_padded[:batch, :out_dim]


# ----------------------------------------------------------------------------
# Deterministic parameter construction (mirrors _DbNNClassifier.__init__ /
# nn.Linear default init) and a pure-JAX reference forward.
# ----------------------------------------------------------------------------
def build_params(key, in_dim, out_dim, n_layers, hidden_dim):
    """Returns (weights, biases) already transposed to (in, out) layout."""
    if n_layers == 0:
        dims = [(in_dim, out_dim)]
    else:
        dims = [(in_dim, hidden_dim)]
        for _ in range(n_layers):
            dims.append((hidden_dim, hidden_dim))
        dims.append((hidden_dim, out_dim))

    weights, biases = [], []
    for (d_in, d_out) in dims:
        key, kw, kb = jax.random.split(key, 3)
        bound = 1.0 / jnp.sqrt(jnp.float32(d_in))
        w = jax.random.uniform(kw, (d_in, d_out), jnp.float32, -bound, bound)
        b = jax.random.uniform(kb, (1, d_out), jnp.float32, -bound, bound)
        weights.append(w)
        biases.append(b)
    return weights, biases


def reference_forward(x, weights, biases, use_bf16=True):
    h = x.astype(jnp.float32)
    for i, (w, b) in enumerate(zip(weights, biases)):
        if use_bf16:
            h = jnp.dot(h.astype(jnp.bfloat16), w.astype(jnp.bfloat16),
                        preferred_element_type=jnp.float32) + b
        else:
            h = jnp.dot(h, w, preferred_element_type=jnp.float32) + b
        if i < len(weights) - 1:
            h = jnp.maximum(h, 0.0)
    return jax.nn.log_softmax(h, axis=1)


if __name__ == "__main__":
    # Module configuration (small, deterministic, matches module defaults).
    in_dim = 32
    out_dim = 16
    hidden_dim = 128          # kwargs.get('hidden_dim', 128)
    data_size = 500
    # size_to_layers="0:1,1000:2" evaluated at data_size=500 -> n_layers = 1
    n_layers = PiecewiseLinearDiscreteFn.from_string("0:1,1000:2")(data_size)

    key = jax.random.PRNGKey(0)
    key, kx = jax.random.split(key)
    batch = 256
    x = jax.random.normal(kx, (batch, in_dim), jnp.float32)

    weights, biases = build_params(key, in_dim, out_dim, n_layers, hidden_dim)

    # One-time parameter prep (padding + bf16 cast), reused across calls.
    params = prepare_db_nn_params(weights, biases, use_bf16=True)

    # block_batch=128 -> 128-row tiles over a 2-step pipelined grid (demo scale).
    out = db_nn_classifier_forward(x, params, block_batch=128)
    out = jax.block_until_ready(out)

    assert out.shape == (batch, out_dim)
    assert bool(jnp.all(jnp.isfinite(out))), "non-finite values in output"

    # Tight check vs a reference with identical bf16-operand matmuls.
    ref_bf16 = reference_forward(x, weights, biases, use_bf16=True)
    assert jnp.allclose(out, ref_bf16, atol=2e-3, rtol=2e-3), "mismatch vs bf16 ref"

    # Loose check vs the pure-f32 module semantics (bf16 quantization only).
    ref_f32 = reference_forward(x, weights, biases, use_bf16=False)
    assert jnp.allclose(out, ref_f32, atol=5e-2, rtol=5e-2), "mismatch vs f32 ref"

    print("KERNEL_OK")
</pallas_src>

<mosaic_0001>
module attributes {stable_mosaic.version = 11 : i64} {
  func.func @_mlp_logsoftmax_kernel(%arg0: i32, %arg1: memref<128x32xbf16, #tpu.memory_space<vmem>>, %arg2: memref<32x128xbf16, #tpu.memory_space<vmem>>, %arg3: memref<1x128xf32, #tpu.memory_space<vmem>>, %arg4: memref<128x128xbf16, #tpu.memory_space<vmem>>, %arg5: memref<1x128xf32, #tpu.memory_space<vmem>>, %arg6: memref<128x128xbf16, #tpu.memory_space<vmem>>, %arg7: memref<1x128xf32, #tpu.memory_space<vmem>>, %arg8: memref<128x128xf32, #tpu.memory_space<vmem>>) attributes {dimension_semantics = [#tpu.dimension_semantics<parallel>], iteration_bounds = array<i64: 2>, scalar_prefetch = 0 : i64, scratch_operands = 0 : i64, tpu.core_type = #tpu.core_type<tc>, window_params = [{transform_indices = @transform_0, window_bounds = array<i64: 128, 32>}, {pipeline_mode = #tpu.pipeline_mode<synchronous>, transform_indices = @transform_1, window_bounds = array<i64: 32, 128>}, {pipeline_mode = #tpu.pipeline_mode<synchronous>, transform_indices = @transform_2, window_bounds = array<i64: 1, 128>}, {pipeline_mode = #tpu.pipeline_mode<synchronous>, transform_indices = @transform_3, window_bounds = array<i64: 128, 128>}, {pipeline_mode = #tpu.pipeline_mode<synchronous>, transform_indices = @transform_4, window_bounds = array<i64: 1, 128>}, {pipeline_mode = #tpu.pipeline_mode<synchronous>, transform_indices = @transform_5, window_bounds = array<i64: 128, 128>}, {pipeline_mode = #tpu.pipeline_mode<synchronous>, transform_indices = @transform_6, window_bounds = array<i64: 1, 128>}, {transform_indices = @transform_7, window_bounds = array<i64: 128, 128>}]} {
    %c0 = arith.constant 0 : index
    %c0_0 = arith.constant 0 : index
    %0 = vector.load %arg1[%c0, %c0_0] : memref<128x32xbf16, #tpu.memory_space<vmem>>, vector<128x32xbf16>
    %c0_1 = arith.constant 0 : index
    %c0_2 = arith.constant 0 : index
    %1 = vector.load %arg2[%c0_1, %c0_2] : memref<32x128xbf16, #tpu.memory_space<vmem>>, vector<32x128xbf16>
    %c0_3 = arith.constant 0 : index
    %c0_4 = arith.constant 0 : index
    %2 = vector.load %arg3[%c0_3, %c0_4] : memref<1x128xf32, #tpu.memory_space<vmem>>, vector<1x128xf32>
    %cst = arith.constant dense<0.000000e+00> : vector<128x128xf32>
    %3 = tpu.matmul %0, %1, %cst {dimension_numbers = #tpu.dot_dimension_numbers<[1], [0], [0], [1], [0, 0, 1, 1], [], []>} : vector<128x32xbf16>, vector<32x128xbf16>, vector<128x128xf32> -> vector<128x128xf32>
    %4 = vector.broadcast %2 : vector<1x128xf32> to vector<128x128xf32>
    %5 = arith.addf %3, %4 : vector<128x128xf32>
    %cst_5 = arith.constant 0.000000e+00 : f32
    %6 = vector.broadcast %cst_5 : f32 to vector<128x128xf32>
    %7 = arith.maximumf %5, %6 : vector<128x128xf32>
    %c0_6 = arith.constant 0 : index
    %c0_7 = arith.constant 0 : index
    %8 = vector.load %arg4[%c0_6, %c0_7] : memref<128x128xbf16, #tpu.memory_space<vmem>>, vector<128x128xbf16>
    %c0_8 = arith.constant 0 : index
    %c0_9 = arith.constant 0 : index
    %9 = vector.load %arg5[%c0_8, %c0_9] : memref<1x128xf32, #tpu.memory_space<vmem>>, vector<1x128xf32>
    %10 = arith.truncf %7 : vector<128x128xf32> to vector<128x128xbf16>
    %cst_10 = arith.constant dense<0.000000e+00> : vector<128x128xf32>
    %11 = tpu.matmul %10, %8, %cst_10 {dimension_numbers = #tpu.dot_dimension_numbers<[1], [0], [0], [1], [0, 0, 1, 1], [], []>} : vector<128x128xbf16>, vector<128x128xbf16>, vector<128x128xf32> -> vector<128x128xf32>
    %12 = vector.broadcast %9 : vector<1x128xf32> to vector<128x128xf32>
    %13 = arith.addf %11, %12 : vector<128x128xf32>
    %cst_11 = arith.constant 0.000000e+00 : f32
    %14 = vector.broadcast %cst_11 : f32 to vector<128x128xf32>
    %15 = arith.maximumf %13, %14 : vector<128x128xf32>
    %c0_12 = arith.constant 0 : index
    %c0_13 = arith.constant 0 : index
    %16 = vector.load %arg6[%c0_12, %c0_13] : memref<128x128xbf16, #tpu.memory_space<vmem>>, vector<128x128xbf16>
    %c0_14 = arith.constant 0 : index
    %c0_15 = arith.constant 0 : index
    %17 = vector.load %arg7[%c0_14, %c0_15] : memref<1x128xf32, #tpu.memory_space<vmem>>, vector<1x128xf32>
    %18 = arith.truncf %15 : vector<128x128xf32> to vector<128x128xbf16>
    %cst_16 = arith.constant dense<0.000000e+00> : vector<128x128xf32>
    %19 = tpu.matmul %18, %16, %cst_16 {dimension_numbers = #tpu.dot_dimension_numbers<[1], [0], [0], [1], [0, 0, 1, 1], [], []>} : vector<128x128xbf16>, vector<128x128xbf16>, vector<128x128xf32> -> vector<128x128xf32>
    %20 = vector.broadcast %17 : vector<1x128xf32> to vector<128x128xf32>
    %21 = arith.addf %19, %20 : vector<128x128xf32>
    %cst_17 = arith.constant dense<0xFF800000> : vector<128xf32>
    %22 = vector.multi_reduction <maximumf>, %21, %cst_17 [1] : vector<128x128xf32> to vector<128xf32>
    %23 = vector.shape_cast %22 : vector<128xf32> to vector<128x1xf32>
    %24 = vector.broadcast %23 : vector<128x1xf32> to vector<128x128xf32>
    %25 = arith.subf %21, %24 : vector<128x128xf32>
    %26 = math.exp %25 : vector<128x128xf32>
    %cst_18 = arith.constant dense<0.000000e+00> : vector<128xf32>
    %27 = vector.multi_reduction <add>, %26, %cst_18 [1] : vector<128x128xf32> to vector<128xf32>
    %28 = vector.shape_cast %27 : vector<128xf32> to vector<128x1xf32>
    %29 = math.log %28 : vector<128x1xf32>
    %30 = vector.broadcast %29 : vector<128x1xf32> to vector<128x128xf32>
    %31 = arith.subf %25, %30 : vector<128x128xf32>
    %c0_19 = arith.constant 0 : index
    %c0_20 = arith.constant 0 : index
    %32 = vector.load %arg8[%c0_19, %c0_20] : memref<128x128xf32, #tpu.memory_space<vmem>>, vector<128x128xf32>
    tpu.vector_store %arg8[%c0_19, %c0_20], %31 {strides = array<i32>} : memref<128x128xf32, #tpu.memory_space<vmem>>, vector<128x128xf32>,
    return
  }
  func.func @transform_0(%arg0: i32) -> (i32, i32) {
    %c0_i32 = arith.constant 0 : i32
    %c0_i32_0 = arith.constant 0 : i32
    return %arg0, %c0_i32 : i32, i32
  }
  func.func @transform_1(%arg0: i32) -> (i32, i32) {
    %c0_i32 = arith.constant 0 : i32
    %c0_i32_0 = arith.constant 0 : i32
    %c0_i32_1 = arith.constant 0 : i32
    return %c0_i32, %c0_i32_0 : i32, i32
  }
  func.func @transform_2(%arg0: i32) -> (i32, i32) {
    %c0_i32 = arith.constant 0 : i32
    %c0_i32_0 = arith.constant 0 : i32
    %c0_i32_1 = arith.constant 0 : i32
    return %c0_i32, %c0_i32_0 : i32, i32
  }
  func.func @transform_3(%arg0: i32) -> (i32, i32) {
    %c0_i32 = arith.constant 0 : i32
    %c0_i32_0 = arith.constant 0 : i32
    %c0_i32_1 = arith.constant 0 : i32
    return %c0_i32, %c0_i32_0 : i32, i32
  }
  func.func @transform_4(%arg0: i32) -> (i32, i32) {
    %c0_i32 = arith.constant 0 : i32
    %c0_i32_0 = arith.constant 0 : i32
    %c0_i32_1 = arith.constant 0 : i32
    return %c0_i32, %c0_i32_0 : i32, i32
  }
  func.func @transform_5(%arg0: i32) -> (i32, i32) {
    %c0_i32 = arith.constant 0 : i32
    %c0_i32_0 = arith.constant 0 : i32
    %c0_i32_1 = arith.constant 0 : i32
    return %c0_i32, %c0_i32_0 : i32, i32
  }
  func.func @transform_6(%arg0: i32) -> (i32, i32) {
    %c0_i32 = arith.constant 0 : i32
    %c0_i32_0 = arith.constant 0 : i32
    %c0_i32_1 = arith.constant 0 : i32
    return %c0_i32, %c0_i32_0 : i32, i32
  }
  func.func @transform_7(%arg0: i32) -> (i32, i32) {
    %c0_i32 = arith.constant 0 : i32
    %c0_i32_0 = arith.constant 0 : i32
    return %arg0, %c0_i32 : i32, i32
  }
}

module attributes {stable_mosaic.version = 11 : i64} {
  func.func @_mlp_logsoftmax_kernel(%arg0: i32, %arg1: memref<128x32xbf16, #tpu.memory_space<vmem>>, %arg2: memref<32x128xbf16, #tpu.memory_space<vmem>>, %arg3: memref<1x128xf32, #tpu.memory_space<vmem>>, %arg4: memref<128x128xbf16, #tpu.memory_space<vmem>>, %arg5: memref<1x128xf32, #tpu.memory_space<vmem>>, %arg6: memref<128x128xbf16, #tpu.memory_space<vmem>>, %arg7: memref<1x128xf32, #tpu.memory_space<vmem>>, %arg8: memref<128x128xf32, #tpu.memory_space<vmem>>) attributes {dimension_semantics = [#tpu.dimension_semantics<parallel>], iteration_bounds = array<i64: 2>, scalar_prefetch = 0 : i64, scratch_operands = 0 : i64, tpu.core_type = #tpu.core_type<tc>, window_params = [{transform_indices = @transform_0, window_bounds = array<i64: 128, 32>}, {pipeline_mode = #tpu.pipeline_mode<synchronous>, transform_indices = @transform_1, window_bounds = array<i64: 32, 128>}, {pipeline_mode = #tpu.pipeline_mode<synchronous>, transform_indices = @transform_2, window_bounds = array<i64: 1, 128>}, {pipeline_mode = #tpu.pipeline_mode<synchronous>, transform_indices = @transform_3, window_bounds = array<i64: 128, 128>}, {pipeline_mode = #tpu.pipeline_mode<synchronous>, transform_indices = @transform_4, window_bounds = array<i64: 1, 128>}, {pipeline_mode = #tpu.pipeline_mode<synchronous>, transform_indices = @transform_5, window_bounds = array<i64: 128, 128>}, {pipeline_mode = #tpu.pipeline_mode<synchronous>, transform_indices = @transform_6, window_bounds = array<i64: 1, 128>}, {transform_indices = @transform_7, window_bounds = array<i64: 128, 128>}]} {
    %c0 = arith.constant 0 : index
    %c0_0 = arith.constant 0 : index
    %0 = vector.load %arg1[%c0, %c0_0] : memref<128x32xbf16, #tpu.memory_space<vmem>>, vector<128x32xbf16>
    %c0_1 = arith.constant 0 : index
    %c0_2 = arith.constant 0 : index
    %1 = vector.load %arg2[%c0_1, %c0_2] : memref<32x128xbf16, #tpu.memory_space<vmem>>, vector<32x128xbf16>
    %c0_3 = arith.constant 0 : index
    %c0_4 = arith.constant 0 : index
    %2 = vector.load %arg3[%c0_3, %c0_4] : memref<1x128xf32, #tpu.memory_space<vmem>>, vector<1x128xf32>
    %cst = arith.constant dense<0.000000e+00> : vector<128x128xf32>
    %3 = tpu.matmul %0, %1, %cst {dimension_numbers = #tpu.dot_dimension_numbers<[1], [0], [0], [1], [0, 0, 1, 1], [], []>} : vector<128x32xbf16>, vector<32x128xbf16>, vector<128x128xf32> -> vector<128x128xf32>
    %4 = vector.broadcast %2 : vector<1x128xf32> to vector<128x128xf32>
    %5 = arith.addf %3, %4 : vector<128x128xf32>
    %cst_5 = arith.constant 0.000000e+00 : f32
    %6 = vector.broadcast %cst_5 : f32 to vector<128x128xf32>
    %7 = arith.maximumf %5, %6 : vector<128x128xf32>
    %c0_6 = arith.constant 0 : index
    %c0_7 = arith.constant 0 : index
    %8 = vector.load %arg4[%c0_6, %c0_7] : memref<128x128xbf16, #tpu.memory_space<vmem>>, vector<128x128xbf16>
    %c0_8 = arith.constant 0 : index
    %c0_9 = arith.constant 0 : index
    %9 = vector.load %arg5[%c0_8, %c0_9] : memref<1x128xf32, #tpu.memory_space<vmem>>, vector<1x128xf32>
    %10 = arith.truncf %7 : vector<128x128xf32> to vector<128x128xbf16>
    %cst_10 = arith.constant dense<0.000000e+00> : vector<128x128xf32>
    %11 = tpu.matmul %10, %8, %cst_10 {dimension_numbers = #tpu.dot_dimension_numbers<[1], [0], [0], [1], [0, 0, 1, 1], [], []>} : vector<128x128xbf16>, vector<128x128xbf16>, vector<128x128xf32> -> vector<128x128xf32>
    %12 = vector.broadcast %9 : vector<1x128xf32> to vector<128x128xf32>
    %13 = arith.addf %11, %12 : vector<128x128xf32>
    %cst_11 = arith.constant 0.000000e+00 : f32
    %14 = vector.broadcast %cst_11 : f32 to vector<128x128xf32>
    %15 = arith.maximumf %13, %14 : vector<128x128xf32>
    %c0_12 = arith.constant 0 : index
    %c0_13 = arith.constant 0 : index
    %16 = vector.load %arg6[%c0_12, %c0_13] : memref<128x128xbf16, #tpu.memory_space<vmem>>, vector<128x128xbf16>
    %c0_14 = arith.constant 0 : index
    %c0_15 = arith.constant 0 : index
    %17 = vector.load %arg7[%c0_14, %c0_15] : memref<1x128xf32, #tpu.memory_space<vmem>>, vector<1x128xf32>
    %18 = arith.truncf %15 : vector<128x128xf32> to vector<128x128xbf16>
    %cst_16 = arith.constant dense<0.000000e+00> : vector<128x128xf32>
    %19 = tpu.matmul %18, %16, %cst_16 {dimension_numbers = #tpu.dot_dimension_numbers<[1], [0], [0], [1], [0, 0, 1, 1], [], []>} : vector<128x128xbf16>, vector<128x128xbf16>, vector<128x128xf32> -> vector<128x128xf32>
    %20 = vector.broadcast %17 : vector<1x128xf32> to vector<128x128xf32>
    %21 = arith.addf %19, %20 : vector<128x128xf32>
    %cst_17 = arith.constant dense<0xFF800000> : vector<128xf32>
    %22 = vector.multi_reduction <maximumf>, %21, %cst_17 [1] : vector<128x128xf32> to vector<128xf32>
    %23 = vector.shape_cast %22 : vector<128xf32> to vector<128x1xf32>
    %24 = vector.broadcast %23 : vector<128x1xf32> to vector<128x128xf32>
    %25 = arith.subf %21, %24 : vector<128x128xf32>
    %26 = math.exp %25 : vector<128x128xf32>
    %cst_18 = arith.constant dense<0.000000e+00> : vector<128xf32>
    %27 = vector.multi_reduction <add>, %26, %cst_18 [1] : vector<128x128xf32> to vector<128xf32>
    %28 = vector.shape_cast %27 : vector<128xf32> to vector<128x1xf32>
    %29 = math.log %28 : vector<128x1xf32>
    %30 = vector.broadcast %29 : vector<128x1xf32> to vector<128x128xf32>
    %31 = arith.subf %25, %30 : vector<128x128xf32>
    %c0_19 = arith.constant 0 : index
    %c0_20 = arith.constant 0 : index
    %32 = vector.load %arg8[%c0_19, %c0_20] : memref<128x128xf32, #tpu.memory_space<vmem>>, vector<128x128xf32>
    tpu.vector_store %arg8[%c0_19, %c0_20], %31 {strides = array<i32>} : memref<128x128xf32, #tpu.memory_space<vmem>>, vector<128x128xf32>,
    return
  }
  func.func @transform_0(%arg0: i32) -> (i32, i32) {
    %c0_i32 = arith.constant 0 : i32
    %c0_i32_0 = arith.constant 0 : i32
    return %arg0, %c0_i32 : i32, i32
  }
  func.func @transform_1(%arg0: i32) -> (i32, i32) {
    %c0_i32 = arith.constant 0 : i32
    %c0_i32_0 = arith.constant 0 : i32
    %c0_i32_1 = arith.constant 0 : i32
    return %c0_i32, %c0_i32_0 : i32, i32
  }
  func.func @transform_2(%arg0: i32) -> (i32, i32) {
    %c0_i32 = arith.constant 0 : i32
    %c0_i32_0 = arith.constant 0 : i32
    %c0_i32_1 = arith.constant 0 : i32
    return %c0_i32, %c0_i32_0 : i32, i32
  }
  func.func @transform_3(%arg0: i32) -> (i32, i32) {
    %c0_i32 = arith.constant 0 : i32
    %c0_i32_0 = arith.constant 0 : i32
    %c0_i32_1 = arith.constant 0 : i32
    return %c0_i32, %c0_i32_0 : i32, i32
  }
  func.func @transform_4(%arg0: i32) -> (i32, i32) {
    %c0_i32 = arith.constant 0 : i32
    %c0_i32_0 = arith.constant 0 : i32
    %c0_i32_1 = arith.constant 0 : i32
    return %c0_i32, %c0_i32_0 : i32, i32
  }
  func.func @transform_5(%arg0: i32) -> (i32, i32) {
    %c0_i32 = arith.constant 0 : i32
    %c0_i32_0 = arith.constant 0 : i32
    %c0_i32_1 = arith.constant 0 : i32
    return %c0_i32, %c0_i32_0 : i32, i32
  }
  func.func @transform_6(%arg0: i32) -> (i32, i32) {
    %c0_i32 = arith.constant 0 : i32
    %c0_i32_0 = arith.constant 0 : i32
    %c0_i32_1 = arith.constant 0 : i32
    return %c0_i32, %c0_i32_0 : i32, i32
  }
  func.func @transform_7(%arg0: i32) -> (i32, i32) {
    %c0_i32 = arith.constant 0 : i32
    %c0_i32_0 = arith.constant 0 : i32
    return %arg0, %c0_i32 : i32, i32
  }
}

</mosaic_0001>

<llo_original>
// kernel: tpu_custom_call.1
$region0: #{tpu_custom_call.1}
  #allocation0 [shape = 'u32[]', space=smem, size = 0x4, offset = 0x4, fixed_abs, tag = 'smem constant byte address 0x4 - core index']
  #allocation1 [shape = 'u32[144,128]{1,0:T(1,128)}', space=vmem, size = 0x12000, scoped, tag = 'internal scratch']
  %s0 = inlined_call_operand.vmem [shape: bf16[256,32], index: 0, kind: input, shape index: {}]
  %s1 = inlined_call_operand.vmem [shape: bf16[32,128], index: 1, kind: input, shape index: {}]
  %s2 = inlined_call_operand.vmem [shape: f32[1,128], index: 2, kind: input, shape index: {}]
  %s3 = inlined_call_operand.vmem [shape: bf16[128,128], index: 3, kind: input, shape index: {}]
  %s4 = inlined_call_operand.vmem [shape: f32[1,128], index: 4, kind: input, shape index: {}]
  %s5 = inlined_call_operand.vmem [shape: bf16[128,128], index: 5, kind: input, shape index: {}]
  %s6 = inlined_call_operand.vmem [shape: f32[1,128], index: 6, kind: input, shape index: {}]
  %s7 = inlined_call_operand.hbm [shape: f32[256,128], index: 7, kind: output, shape index: {}]
  %s8 = sld [smem:[#allocation0]]
  $region61: #{tpu_custom_call.1} parent=0
    _
  %s10 = ssub.s32 1, %s8
  %s11 = scalar_select 0, %s10, %s8
  $region1: #{tpu_custom_call.1} parent=0
    #allocation2 [shape = 'u8[131072]{0}', space=vmem, size = 0x20000, scoped, tag = 'output window, operand 0']
    #allocation3 [shape = 's32[2]{0}', space=sflag, size = 0x8, scoped, tag = 'scoped memory for tpu_custom_call.1']
    %12 = vsyncpa [#allocation3], 0
    %s13 = scalar_lea.sflag [#allocation3], 1
    %14 = vsyncpa %s13, 0
    loop: start=0, step=1, limit=4
    $region2: #{tpu_custom_call.1} parent=1 // loop_pre_header
      _
    $region3: #{tpu_custom_call.1} parent=1 // loop_header
      %s16 = sphi 0, %s20
      %p17 = scmp.ge.s32.totalorder %s16, 4
      %s26 = sphi 0, %s28
      %s29 = sphi 0, %s26
      %s30 = sphi 0, %s29
      %s46 = sphi 0, %s30
      %s50 = sphi 0, %s50
      %s52 = sphi 0, %s50
      %s53 = sphi 0, %s52
      %s67 = sphi 0, %s53
      %s71 = sphi 0, %s71
      %s73 = sphi 0, %s71
      %s74 = sphi 0, %s73
      %s88 = sphi 0, %s74
      %s92 = sphi 0, %s92
      %s94 = sphi 0, %s92
      %s95 = sphi 0, %s94
      %s109 = sphi 0, %s95
      %s113 = sphi 0, %s113
      %s115 = sphi 0, %s113
      %s116 = sphi 0, %s115
      %s130 = sphi 0, %s116
      %s134 = sphi 0, %s134
      %s136 = sphi 0, %s134
      %s137 = sphi 0, %s136
      %s151 = sphi 0, %s137
      %s155 = sphi 0, %s155
      %s157 = sphi 0, %s155
      %s158 = sphi 0, %s157
      %s172 = sphi 0, %s158
      %s178 = sphi 0, %s180
      %s181 = sphi 0, %s178
      %s182 = sphi 0, %s181
      %s198 = sphi 0, %s182
    $region4: #{tpu_custom_call.1} parent=1 // loop_header_branch
      %19 = sbr.rel (%p17) target = $region8
    $region5: #{tpu_custom_call.1} parent=1 // loop_body
      %s21 = ssub.s32 %s16, 1
      %s22 = ssub.s32 %s16, 2
      %s23 = sadd.s32 %s16, 1
      %s24 = ssub.s32 %s16, %s23
      %p25 = scmp.eq.s32.totalorder %s24, 0
      %s27 = sadd.s32 %s26, 1
      %s28 = scalar_select %p25, %s26, %s27
      %p31 = pneg %p25
      %p32 = scmp.eq.s32.totalorder %s16, 1
      %p33 = por %p31, %p32
      %p34 = scmp.ne.s32.totalorder %s26, %s29
      %p35 = scmp.eq.s32.totalorder %s16, 0
      %p36 = por %p34, %p35
      %p37 = scmp.ne.s32.totalorder %s26, %s29
      %p38 = scmp.eq.s32.totalorder %s21, 1
      %p39 = por %p37, %p38
      %p40 = scmp.ne.s32.totalorder %s29, %s30
      %p41 = scmp.eq.s32.totalorder %s21, 0
      %p42 = por %p40, %p41
      %p43 = scmp.ne.s32.totalorder %s29, %s30
      %p44 = scmp.eq.s32.totalorder %s22, 1
      %p45 = por %p43, %p44
      %p47 = scmp.ne.s32.totalorder %s30, %s46
      %p48 = scmp.eq.s32.totalorder %s22, 0
      %p49 = por %p47, %p48
      %s51 = sadd.s32 %s50, 1
      %p54 = scmp.eq.s32.totalorder %s16, 1
      %p55 = scmp.ne.s32.totalorder %s50, %s52
      %p56 = scmp.eq.s32.totalorder %s16, 0
      %p57 = por %p55, %p56
      %p58 = scmp.ne.s32.totalorder %s50, %s52
      %p59 = scmp.eq.s32.totalorder %s21, 1
      %p60 = por %p58, %p59
      %p61 = scmp.ne.s32.totalorder %s52, %s53
      %p62 = scmp.eq.s32.totalorder %s21, 0
      %p63 = por %p61, %p62
      %p64 = scmp.ne.s32.totalorder %s52, %s53
      %p65 = scmp.eq.s32.totalorder %s22, 1
      %p66 = por %p64, %p65
      %p68 = scmp.ne.s32.totalorder %s53, %s67
      %p69 = scmp.eq.s32.totalorder %s22, 0
      %p70 = por %p68, %p69
      %s72 = sadd.s32 %s71, 1
      %p75 = scmp.eq.s32.totalorder %s16, 1
      %p76 = scmp.ne.s32.totalorder %s71, %s73
      %p77 = scmp.eq.s32.totalorder %s16, 0
      %p78 = por %p76, %p77
      %p79 = scmp.ne.s32.totalorder %s71, %s73
      %p80 = scmp.eq.s32.totalorder %s21, 1
      %p81 = por %p79, %p80
      %p82 = scmp.ne.s32.totalorder %s73, %s74
      %p83 = scmp.eq.s32.totalorder %s21, 0
      %p84 = por %p82, %p83
      %p85 = scmp.ne.s32.totalorder %s73, %s74
      %p86 = scmp.eq.s32.totalorder %s22, 1
      %p87 = por %p85, %p86
      %p89 = scmp.ne.s32.totalorder %s74, %s88
      %p90 = scmp.eq.s32.totalorder %s22, 0
      %p91 = por %p89, %p90
      %s93 = sadd.s32 %s92, 1
      %p96 = scmp.eq.s32.totalorder %s16, 1
      %p97 = scmp.ne.s32.totalorder %s92, %s94
      %p98 = scmp.eq.s32.totalorder %s16, 0
      %p99 = por %p97, %p98
      %p100 = scmp.ne.s32.totalorder %s92, %s94
      %p101 = scmp.eq.s32.totalorder %s21, 1
      %p102 = por %p100, %p101
      %p103 = scmp.ne.s32.totalorder %s94, %s95
      %p104 = scmp.eq.s32.totalorder %s21, 0
      %p105 = por %p103, %p104
      %p106 = scmp.ne.s32.totalorder %s94, %s95
      %p107 = scmp.eq.s32.totalorder %s22, 1
      %p108 = por %p106, %p107
      %p110 = scmp.ne.s32.totalorder %s95, %s109
      %p111 = scmp.eq.s32.totalorder %s22, 0
      %p112 = por %p110, %p111
      %s114 = sadd.s32 %s113, 1
      %p117 = scmp.eq.s32.totalorder %s16, 1
      %p118 = scmp.ne.s32.totalorder %s113, %s115
      %p119 = scmp.eq.s32.totalorder %s16, 0
      %p120 = por %p118, %p119
      %p121 = scmp.ne.s32.totalorder %s113, %s115
      %p122 = scmp.eq.s32.totalorder %s21, 1
      %p123 = por %p121, %p122
      %p124 = scmp.ne.s32.totalorder %s115, %s116
      %p125 = scmp.eq.s32.totalorder %s21, 0
      %p126 = por %p124, %p125
      %p127 = scmp.ne.s32.totalorder %s115, %s116
      %p128 = scmp.eq.s32.totalorder %s22, 1
      %p129 = por %p127, %p128
      %p131 = scmp.ne.s32.totalorder %s116, %s130
      %p132 = scmp.eq.s32.totalorder %s22, 0
      %p133 = por %p131, %p132
      %s135 = sadd.s32 %s134, 1
      %p138 = scmp.eq.s32.totalorder %s16, 1
      %p139 = scmp.ne.s32.totalorder %s134, %s136
      %p140 = scmp.eq.s32.totalorder %s16, 0
      %p141 = por %p139, %p140
      %p142 = scmp.ne.s32.totalorder %s134, %s136
      %p143 = scmp.eq.s32.totalorder %s21, 1
      %p144 = por %p142, %p143
      %p145 = scmp.ne.s32.totalorder %s136, %s137
      %p146 = scmp.eq.s32.totalorder %s21, 0
      %p147 = por %p145, %p146
      %p148 = scmp.ne.s32.totalorder %s136, %s137
      %p149 = scmp.eq.s32.totalorder %s22, 1
      %p150 = por %p148, %p149
      %p152 = scmp.ne.s32.totalorder %s137, %s151
      %p153 = scmp.eq.s32.totalorder %s22, 0
      %p154 = por %p152, %p153
      %s156 = sadd.s32 %s155, 1
      %p159 = scmp.eq.s32.totalorder %s16, 1
      %p160 = scmp.ne.s32.totalorder %s155, %s157
      %p161 = scmp.eq.s32.totalorder %s16, 0
      %p162 = por %p160, %p161
      %p163 = scmp.ne.s32.totalorder %s155, %s157
      %p164 = scmp.eq.s32.totalorder %s21, 1
      %p165 = por %p163, %p164
      %p166 = scmp.ne.s32.totalorder %s157, %s158
      %p167 = scmp.eq.s32.totalorder %s21, 0
      %p168 = por %p166, %p167
      %p169 = scmp.ne.s32.totalorder %s157, %s158
      %p170 = scmp.eq.s32.totalorder %s22, 1
      %p171 = por %p169, %p170
      %p173 = scmp.ne.s32.totalorder %s158, %s172
      %p174 = scmp.eq.s32.totalorder %s22, 0
      %p175 = por %p173, %p174
      %s176 = ssub.s32 %s16, %s23
      %p177 = scmp.eq.s32.totalorder %s176, 0
      %s179 = sadd.s32 %s178, 1
      %s180 = scalar_select %p177, %s178, %s179
      %p183 = pneg %p177
      %p184 = scmp.eq.s32.totalorder %s16, 1
      %p185 = por %p183, %p184
      %p186 = scmp.ne.s32.totalorder %s178, %s181
      %p187 = scmp.eq.s32.totalorder %s16, 0
      %p188 = por %p186, %p187
      %p189 = scmp.ne.s32.totalorder %s178, %s181
      %p190 = scmp.eq.s32.totalorder %s21, 1
      %p191 = por %p189, %p190
      %p192 = scmp.ne.s32.totalorder %s181, %s182
      %p193 = scmp.eq.s32.totalorder %s21, 0
      %p194 = por %p192, %p193
      %p195 = scmp.ne.s32.totalorder %s181, %s182
      %p196 = scmp.eq.s32.totalorder %s22, 1
      %p197 = por %p195, %p196
      %p199 = scmp.ne.s32.totalorder %s182, %s198
      %p200 = scmp.eq.s32.totalorder %s22, 0
      %p201 = por %p199, %p200
      %p202 = scmp.le.s32.totalorder 1, %s16
      %p203 = scmp.lt.s32.totalorder %s16, 3
      %p204 = pnand %p202, %p203
      %p205 = pneg %p204
      // Predicated region
      $region9: #{tpu_custom_call.1} parent=5 // pred_check
        _
      $region10: #{tpu_custom_call.1} parent=5 // pred_check_branch
        %207 = sbr.rel (%p204) target = $region12
      $region11: #{tpu_custom_call.1} parent=5 // pred_region
        %s208 = ssub.s32 %s16, 1
        // Predicated region
        $region13: #{tpu_custom_call.1} parent=11 // pred_check
          %p209 = pneg %p63
        $region14: #{tpu_custom_call.1} parent=11 // pred_check_branch
          %211 = sbr.rel (%p209) target = $region16
        $region15: #{tpu_custom_call.1} parent=11 // pred_region
          _
        $region16: #{tpu_custom_call.1} parent=11 // pred_fallthru
          _
        // Predicated region
        $region17: #{tpu_custom_call.1} parent=11 // pred_check
          %p212 = pneg %p84
        $region18: #{tpu_custom_call.1} parent=11 // pred_check_branch
          %214 = sbr.rel (%p212) target = $region20
        $region19: #{tpu_custom_call.1} parent=11 // pred_region
          _
        $region20: #{tpu_custom_call.1} parent=11 // pred_fallthru
          _
        // Predicated region
        $region21: #{tpu_custom_call.1} parent=11 // pred_check
          %p215 = pneg %p105
        $region22: #{tpu_custom_call.1} parent=11 // pred_check_branch
          %217 = sbr.rel (%p215) target = $region24
        $region23: #{tpu_custom_call.1} parent=11 // pred_region
          _
        $region24: #{tpu_custom_call.1} parent=11 // pred_fallthru
          _
        // Predicated region
        $region25: #{tpu_custom_call.1} parent=11 // pred_check
          %p218 = pneg %p126
        $region26: #{tpu_custom_call.1} parent=11 // pred_check_branch
          %220 = sbr.rel (%p218) target = $region28
        $region27: #{tpu_custom_call.1} parent=11 // pred_region
          _
        $region28: #{tpu_custom_call.1} parent=11 // pred_fallthru
          _
        // Predicated region
        $region29: #{tpu_custom_call.1} parent=11 // pred_check
          %p221 = pneg %p147
        $region30: #{tpu_custom_call.1} parent=11 // pred_check_branch
          %223 = sbr.rel (%p221) target = $region32
        $region31: #{tpu_custom_call.1} parent=11 // pred_region
          _
        $region32: #{tpu_custom_call.1} parent=11 // pred_fallthru
          _
        // Predicated region
        $region33: #{tpu_custom_call.1} parent=11 // pred_check
          %p224 = pneg %p168
        $region34: #{tpu_custom_call.1} parent=11 // pred_check_branch
          %226 = sbr.rel (%p224) target = $region36
        $region35: #{tpu_custom_call.1} parent=11 // pred_region
          _
        $region36: #{tpu_custom_call.1} parent=11 // pred_fallthru
          _
      $region12: #{tpu_custom_call.1} parent=5 // pred_fallthru
        _
      %p227 = scmp.lt.s32.totalorder %s16, 2
      // Predicated region
      $region37: #{tpu_custom_call.1} parent=5 // pred_check
        %p228 = pneg %p227
      $region38: #{tpu_custom_call.1} parent=5 // pred_check_branch
        %230 = sbr.rel (%p228) target = $region40
      $region39: #{tpu_custom_call.1} parent=5 // pred_region
        // Predicated region
        $region41: #{tpu_custom_call.1} parent=39 // pred_check
          %p231 = pneg %p36
        $region42: #{tpu_custom_call.1} parent=39 // pred_check_branch
          %233 = sbr.rel (%p231) target = $region44
        $region43: #{tpu_custom_call.1} parent=39 // pred_region
          %s234 = smul.u32 16, %s16
          %p235 = scmp.lt.s32.totalorder %s234, 31
          %s236 = scalar_select %p235, %s234, 31
          %s237 = smul.addr %s236, 4
          %s238 = scalar_lea.vmem %s0, %s237
          %s239 = smul.u32 16, %s16
        $region44: #{tpu_custom_call.1} parent=39 // pred_fallthru
          _
      $region40: #{tpu_custom_call.1} parent=5 // pred_fallthru
        _
      %p240 = scmp.le.s32.totalorder 1, %s16
      %p241 = scmp.lt.s32.totalorder %s16, 3
      %p242 = pnand %p240, %p241
      %p243 = pneg %p242
      // Predicated region
      $region45: #{tpu_custom_call.1} parent=5 // pred_check
        _
      $region46: #{tpu_custom_call.1} parent=5 // pred_check_branch
        %245 = sbr.rel (%p242) target = $region48
      $region47: #{tpu_custom_call.1} parent=5 // pred_region
        %s246 = ssub.s32 %s16, 1
        %s247 = smul.u32 16, %s21
        %p248 = scmp.lt.s32.totalorder %s247, 31
        %s249 = scalar_select %p248, %s247, 31
        %s250 = smul.addr %s249, 4
        %s251 = scalar_lea.vmem %s0, %s250
        %p252 = pneg %p42
        %p253 = pneg %p39
        %p254 = pneg %p63
        %p255 = pneg %p60
        %p256 = pneg %p84
        %p257 = pneg %p81
        %p258 = pneg %p105
        %p259 = pneg %p102
        %p260 = pneg %p126
        %p261 = pneg %p123
        %p262 = pneg %p147
        %p263 = pneg %p144
        %p264 = pneg %p168
        %p265 = pneg %p165
        %p266 = pneg %p194
        %p267 = pneg %p191
        %s268 = sand.u32 %s181, 1
        %s269 = scalar_lea.sflag [#allocation3], %s268
        %s270 = sand.u32 %s181, 1
        %s271 = smul.addr %s270, 128
        %s272 = scalar_lea.vmem [#allocation2], %s271
        %s273 = smul.u32 16, %s21
        %p274 = scmp.lt.s32.totalorder %s273, 31
        %s275 = scalar_select %p274, %s273, 31
        %s276 = smul.addr %s275, 4
        %s277 = scalar_lea.vmem %s0, %s276
        %s278 = smul.u32 16, %s21
        %s279 = smul.u32 16, %s21
        %v281 = vld [vmem:[%s277] sm:$0xf]
        %v282 = vld [vmem:[%s277 + $0x4] sm:$0xf]
        %v283 = vld [vmem:[%s277 + $0x8] sm:$0xf]
        %v284 = vld [vmem:[%s277 + $0xc] sm:$0xf]
        %v285 = vld [vmem:[%s277 + $0x10] sm:$0xf]
        %v286 = vld [vmem:[%s277 + $0x14] sm:$0xf]
        %v287 = vld [vmem:[%s277 + $0x18] sm:$0xf]
        %v288 = vld [vmem:[%s277 + $0x1c] sm:$0xf]
        %v289 = vld [vmem:[%s277 + $0x20] sm:$0xf]
        %v290 = vld [vmem:[%s277 + $0x24] sm:$0xf]
        %v291 = vld [vmem:[%s277 + $0x28] sm:$0xf]
        %v292 = vld [vmem:[%s277 + $0x2c] sm:$0xf]
        %v293 = vld [vmem:[%s277 + $0x30] sm:$0xf]
        %v294 = vld [vmem:[%s277 + $0x34] sm:$0xf]
        %v295 = vld [vmem:[%s277 + $0x38] sm:$0xf]
        %v296 = vld [vmem:[%s277 + $0x3c] sm:$0xf]
        %v297 = vld [vmem:[%s1] sm:$0xf]
        %v298 = vld [vmem:[%s1 + $0x4] sm:$0xf]
        %v299 = vld [vmem:[%s1 + $0x8] sm:$0xf]
        %v300 = vld [vmem:[%s1 + $0xc] sm:$0xf]
        %v301 = vld [vmem:[%s2] sm:$0x1]
        %v303 = vlaneseq
        %v304 = vshrl.u32 %v303, 7
        %v305 = vsub.s32 0, %v304
        %v306 = vrot.slane %v301, %v305
        %v324 = vunpack.c.l.b16 %v281
        %v325 = vunpack.c.l.b16 %v282
        %v326 = vunpack.c.l.b16 %v283
        %v327 = vunpack.c.l.b16 %v284
        %v328 = vunpack.c.l.b16 %v285
        %v329 = vunpack.c.l.b16 %v286
        %v330 = vunpack.c.l.b16 %v287
        %v331 = vunpack.c.l.b16 %v288
        %v332 = vunpack.c.l.b16 %v289
        %v333 = vunpack.c.l.b16 %v290
        %v334 = vunpack.c.l.b16 %v291
        %v335 = vunpack.c.l.b16 %v292
        %v336 = vunpack.c.l.b16 %v293
        %v337 = vunpack.c.l.b16 %v294
        %v338 = vunpack.c.l.b16 %v295
        %v339 = vunpack.c.l.b16 %v296
        %v340 = vpack.c.b16 %v325, %v324
        %v341 = vpack.c.b16 %v327, %v326
        %v342 = vpack.c.b16 %v329, %v328
        %v343 = vpack.c.b16 %v331, %v330
        %v344 = vpack.c.b16 %v333, %v332
        %v345 = vpack.c.b16 %v335, %v334
        %v346 = vpack.c.b16 %v337, %v336
        %v347 = vpack.c.b16 %v339, %v338
        %v352 = vunpack.c.l.b16 %v297
        %v353 = vunpack.c.l.b16 %v298
        %v354 = vunpack.c.l.b16 %v299
        %v355 = vunpack.c.l.b16 %v300
        %v356 = vpack.c.b16 %v353, %v352
        %v357 = vpack.c.b16 %v355, %v354
        %vm360 = vcmask 261120
        %v362 = vsel %vm360, %v340, 0
        %v365 = vsel %vm360, %v341, 0
        %v368 = vsel %vm360, %v342, 0
        %v371 = vsel %vm360, %v343, 0
        %v374 = vsel %vm360, %v344, 0
        %v377 = vsel %vm360, %v345, 0
        %v380 = vsel %vm360, %v346, 0
        %v383 = vsel %vm360, %v347, 0
        %385 = vmatprep.subr.bf16.mxu0 0
        %386 = vmatpush1.bf16.msra.mxu0 %v356
        %387 = vmatprep.subr.bf16.mxu0 0
        %388 = vmatpush1.bf16.msra.mxu0 %v357
        %389 = vmatprep.subr.bf16.mxu0 0
        %390 = vmatpush1.bf16.msra.mxu0 0
        %391 = vmatprep.subr.bf16.mxu0 0
        %392 = vmatpush1.bf16.msra.mxu0 0
        %393 = vmatprep.subr.bf16.mxu0 0
        %394 = vmatpush1.bf16.msra.mxu0 0
        %395 = vmatprep.subr.bf16.mxu0 0
        %396 = vmatpush1.bf16.msra.mxu0 0
        %397 = vmatprep.subr.bf16.mxu0 0
        %398 = vmatpush1.bf16.msra.mxu0 0
        %399 = vmatprep.subr.bf16.mxu0 0
        %400 = vmatpush1.bf16.msra.mxu0 0
        %401 = vmatprep.subr.bf16.mxu0 0
        %402 = vmatpush1.bf16.msra.mxu0 0
        %403 = vmatprep.subr.bf16.mxu0 0
        %404 = vmatpush1.bf16.msra.mxu0 0
        %405 = vmatprep.subr.bf16.mxu0 0
        %406 = vmatpush1.bf16.msra.mxu0 0
        %407 = vmatprep.subr.bf16.mxu0 0
        %408 = vmatpush1.bf16.msra.mxu0 0
        %409 = vmatprep.subr.bf16.mxu0 0
        %410 = vmatpush1.bf16.msra.mxu0 0
        %411 = vmatprep.subr.bf16.mxu0 0
        %412 = vmatpush1.bf16.msra.mxu0 0
        %413 = vmatprep.subr.bf16.mxu0 0
        %414 = vmatpush1.bf16.msra.mxu0 0
        %415 = vmatprep.subr.bf16.mxu0 0
        %416 = vmatpush1.bf16.msra.mxu0 0
        %417 = vmatprep.mubr.bf16.mxu0 0
        %418 = vmatmul.mubr.bf16.gmra.mrb[0].mxu0 %v362
        %v419 = vpop.f32.mrb[0].mxu0
        %v420 = vadd.f32 %v306, %v419
        %v421 = vpop.f32.mrb[0].mxu0
        %v422 = vpop.f32.mrb[0].mxu0
        %v423 = vadd.f32 %v306, %v422
        %v424 = vpop.f32.mrb[0].mxu0
        %425 = vmatprep.mubr.bf16.mxu0 0
        %426 = vmatmul.mubr.bf16.gmra.mrb[0].mxu0 %v365
        %v427 = vpop.f32.mrb[0].mxu0
        %v428 = vadd.f32 %v306, %v427
        %v429 = vpop.f32.mrb[0].mxu0
        %v430 = vpop.f32.mrb[0].mxu0
        %v431 = vadd.f32 %v306, %v430
        %v432 = vpop.f32.mrb[0].mxu0
        %433 = vmatprep.mubr.bf16.mxu0 0
        %434 = vmatmul.mubr.bf16.gmra.mrb[0].mxu0 %v368
        %v435 = vpop.f32.mrb[0].mxu0
        %v436 = vadd.f32 %v306, %v435
        %v437 = vpop.f32.mrb[0].mxu0
        %v438 = vpop.f32.mrb[0].mxu0
        %v439 = vadd.f32 %v306, %v438
        %v440 = vpop.f32.mrb[0].mxu0
        %441 = vmatprep.mubr.bf16.mxu0 0
        %442 = vmatmul.mubr.bf16.gmra.mrb[0].mxu0 %v371
        %v443 = vpop.f32.mrb[0].mxu0
        %v444 = vadd.f32 %v306, %v443
        %v445 = vpop.f32.mrb[0].mxu0
        %v446 = vpop.f32.mrb[0].mxu0
        %v447 = vadd.f32 %v306, %v446
        %v448 = vpop.f32.mrb[0].mxu0
        %449 = vmatprep.mubr.bf16.mxu0 0
        %450 = vmatmul.mubr.bf16.gmra.mrb[0].mxu0 %v374
        %v451 = vpop.f32.mrb[0].mxu0
        %v452 = vadd.f32 %v306, %v451
        %v453 = vpop.f32.mrb[0].mxu0
        %v454 = vpop.f32.mrb[0].mxu0
        %v455 = vadd.f32 %v306, %v454
        %v456 = vpop.f32.mrb[0].mxu0
        %457 = vmatprep.mubr.bf16.mxu0 0
        %458 = vmatmul.mubr.bf16.gmra.mrb[0].mxu0 %v377
        %v459 = vpop.f32.mrb[0].mxu0
        %v460 = vadd.f32 %v306, %v459
        %v461 = vpop.f32.mrb[0].mxu0
        %v462 = vpop.f32.mrb[0].mxu0
        %v463 = vadd.f32 %v306, %v462
        %v464 = vpop.f32.mrb[0].mxu0
        %465 = vmatprep.mubr.bf16.mxu0 0
        %466 = vmatmul.mubr.bf16.gmra.mrb[0].mxu0 %v380
        %v467 = vpop.f32.mrb[0].mxu0
        %v468 = vadd.f32 %v306, %v467
        %v469 = vpop.f32.mrb[0].mxu0
        %v470 = vpop.f32.mrb[0].mxu0
        %v471 = vadd.f32 %v306, %v470
        %v472 = vpop.f32.mrb[0].mxu0
        %473 = vmatprep.mubr.bf16.mxu0 0
        %474 = vmatmul.mubr.bf16.gmra.mrb[0].mxu0 %v383
        %v475 = vpop.f32.mrb[0].mxu0
        %v476 = vadd.f32 %v306, %v475
        %v477 = vpop.f32.mrb[0].mxu0
        %v478 = vpop.f32.mrb[0].mxu0
        %v479 = vadd.f32 %v306, %v478
        %v480 = vpop.f32.mrb[0].mxu0
        %481 = vdwg.mxu0
        %v482 = vmax.f32 %v420, 0.0
        %v483 = vmax.f32 %v423, 0.0
        %v484 = vmax.f32 %v428, 0.0
        %v485 = vmax.f32 %v431, 0.0
        %v486 = vmax.f32 %v436, 0.0
        %v487 = vmax.f32 %v439, 0.0
        %v488 = vmax.f32 %v444, 0.0
        %v489 = vmax.f32 %v447, 0.0
        %v490 = vmax.f32 %v452, 0.0
        %v491 = vmax.f32 %v455, 0.0
        %v492 = vmax.f32 %v460, 0.0
        %v493 = vmax.f32 %v463, 0.0
        %v494 = vmax.f32 %v468, 0.0
        %v495 = vmax.f32 %v471, 0.0
        %v496 = vmax.f32 %v476, 0.0
        %v497 = vmax.f32 %v479, 0.0
        %v498 = vld [vmem:[%s3] sm:$0xf]
        %v499 = vld [vmem:[%s3 + $0x4] sm:$0xf]
        %v500 = vld [vmem:[%s3 + $0x8] sm:$0xf]
        %v501 = vld [vmem:[%s3 + $0xc] sm:$0xf]
        %v502 = vld [vmem:[%s3 + $0x10] sm:$0xf]
        %v503 = vld [vmem:[%s3 + $0x14] sm:$0xf]
        %v504 = vld [vmem:[%s3 + $0x18] sm:$0xf]
        %v505 = vld [vmem:[%s3 + $0x1c] sm:$0xf]
        %v506 = vld [vmem:[%s3 + $0x20] sm:$0xf]
        %v507 = vld [vmem:[%s3 + $0x24] sm:$0xf]
        %v508 = vld [vmem:[%s3 + $0x28] sm:$0xf]
        %v509 = vld [vmem:[%s3 + $0x2c] sm:$0xf]
        %v510 = vld [vmem:[%s3 + $0x30] sm:$0xf]
        %v511 = vld [vmem:[%s3 + $0x34] sm:$0xf]
        %v512 = vld [vmem:[%s3 + $0x38] sm:$0xf]
        %v513 = vld [vmem:[%s3 + $0x3c] sm:$0xf]
        %v514 = vld [vmem:[%s4] sm:$0x1]
        %v515 = vpack.c.bf16 %v483, %v482
        %v516 = vpack.c.bf16 %v485, %v484
        %v517 = vpack.c.bf16 %v487, %v486
        %v518 = vpack.c.bf16 %v489, %v488
        %v519 = vpack.c.bf16 %v491, %v490
        %v520 = vpack.c.bf16 %v493, %v492
        %v521 = vpack.c.bf16 %v495, %v494
        %v522 = vpack.c.bf16 %v497, %v496
        %v524 = vlaneseq
        %v525 = vshrl.u32 %v524, 7
        %v526 = vsub.s32 0, %v525
        %v527 = vrot.slane %v514, %v526
        %v545 = vunpack.c.l.b16 %v498
        %v546 = vunpack.c.l.b16 %v499
        %v547 = vunpack.c.l.b16 %v500
        %v548 = vunpack.c.l.b16 %v501
        %v549 = vunpack.c.l.b16 %v502
        %v550 = vunpack.c.l.b16 %v503
        %v551 = vunpack.c.l.b16 %v504
        %v552 = vunpack.c.l.b16 %v505
        %v553 = vunpack.c.l.b16 %v506
        %v554 = vunpack.c.l.b16 %v507
        %v555 = vunpack.c.l.b16 %v508
        %v556 = vunpack.c.l.b16 %v509
        %v557 = vunpack.c.l.b16 %v510
        %v558 = vunpack.c.l.b16 %v511
        %v559 = vunpack.c.l.b16 %v512
        %v560 = vunpack.c.l.b16 %v513
        %v561 = vpack.c.b16 %v546, %v545
        %v562 = vpack.c.b16 %v548, %v547
        %v563 = vpack.c.b16 %v550, %v549
        %v564 = vpack.c.b16 %v552, %v551
        %v565 = vpack.c.b16 %v554, %v553
        %v566 = vpack.c.b16 %v556, %v555
        %v567 = vpack.c.b16 %v558, %v557
        %v568 = vpack.c.b16 %v560, %v559
        %577 = vmatprep.subr.bf16.mxu0 0
        %578 = vmatpush1.bf16.msra.mxu0 %v561
        %579 = vmatprep.subr.bf16.mxu0 0
        %580 = vmatpush1.bf16.msra.mxu0 %v562
        %581 = vmatprep.subr.bf16.mxu0 0
        %582 = vmatpush1.bf16.msra.mxu0 %v563
        %583 = vmatprep.subr.bf16.mxu0 0
        %584 = vmatpush1.bf16.msra.mxu0 %v564
        %585 = vmatprep.subr.bf16.mxu0 0
        %586 = vmatpush1.bf16.msra.mxu0 %v565
        %587 = vmatprep.subr.bf16.mxu0 0
        %588 = vmatpush1.bf16.msra.mxu0 %v566
        %589 = vmatprep.subr.bf16.mxu0 0
        %590 = vmatpush1.bf16.msra.mxu0 %v567
        %591 = vmatprep.subr.bf16.mxu0 0
        %592 = vmatpush1.bf16.msra.mxu0 %v568
        %593 = vmatprep.subr.bf16.mxu0 0
        %594 = vmatpush1.bf16.msra.mxu0 0
        %595 = vmatprep.subr.bf16.mxu0 0
        %596 = vmatpush1.bf16.msra.mxu0 0
        %597 = vmatprep.subr.bf16.mxu0 0
        %598 = vmatpush1.bf16.msra.mxu0 0
        %599 = vmatprep.subr.bf16.mxu0 0
        %600 = vmatpush1.bf16.msra.mxu0 0
        %601 = vmatprep.subr.bf16.mxu0 0
        %602 = vmatpush1.bf16.msra.mxu0 0
        %603 = vmatprep.subr.bf16.mxu0 0
        %604 = vmatpush1.bf16.msra.mxu0 0
        %605 = vmatprep.subr.bf16.mxu0 0
        %606 = vmatpush1.bf16.msra.mxu0 0
        %607 = vmatprep.subr.bf16.mxu0 0
        %608 = vmatpush1.bf16.msra.mxu0 0
        %609 = vmatprep.mubr.bf16.mxu0 0
        %610 = vmatmul.mubr.bf16.gmra.mrb[0].mxu0 %v515
        %v611 = vpop.f32.mrb[0].mxu0
        %v612 = vadd.f32 %v527, %v611
        %v613 = vpop.f32.mrb[0].mxu0
        %v614 = vpop.f32.mrb[0].mxu0
        %v615 = vadd.f32 %v527, %v614
        %v616 = vpop.f32.mrb[0].mxu0
        %617 = vmatprep.mubr.bf16.mxu0 0
        %618 = vmatmul.mubr.bf16.gmra.mrb[0].mxu0 %v516
        %v619 = vpop.f32.mrb[0].mxu0
        %v620 = vadd.f32 %v527, %v619
        %v621 = vpop.f32.mrb[0].mxu0
        %v622 = vpop.f32.mrb[0].mxu0
        %v623 = vadd.f32 %v527, %v622
        %v624 = vpop.f32.mrb[0].mxu0
        %625 = vmatprep.mubr.bf16.mxu0 0
        %626 = vmatmul.mubr.bf16.gmra.mrb[0].mxu0 %v517
        %v627 = vpop.f32.mrb[0].mxu0
        %v628 = vadd.f32 %v527, %v627
        %v629 = vpop.f32.mrb[0].mxu0
        %v630 = vpop.f32.mrb[0].mxu0
        %v631 = vadd.f32 %v527, %v630
        %v632 = vpop.f32.mrb[0].mxu0
        %633 = vmatprep.mubr.bf16.mxu0 0
        %634 = vmatmul.mubr.bf16.gmra.mrb[0].mxu0 %v518
        %v635 = vpop.f32.mrb[0].mxu0
        %v636 = vadd.f32 %v527, %v635
        %v637 = vpop.f32.mrb[0].mxu0
        %v638 = vpop.f32.mrb[0].mxu0
        %v639 = vadd.f32 %v527, %v638
        %v640 = vpop.f32.mrb[0].mxu0
        %641 = vmatprep.mubr.bf16.mxu0 0
        %642 = vmatmul.mubr.bf16.gmra.mrb[0].mxu0 %v519
        %v643 = vpop.f32.mrb[0].mxu0
        %v644 = vadd.f32 %v527, %v643
        %v645 = vpop.f32.mrb[0].mxu0
        %v646 = vpop.f32.mrb[0].mxu0
        %v647 = vadd.f32 %v527, %v646
        %v648 = vpop.f32.mrb[0].mxu0
        %649 = vmatprep.mubr.bf16.mxu0 0
        %650 = vmatmul.mubr.bf16.gmra.mrb[0].mxu0 %v520
        %v651 = vpop.f32.mrb[0].mxu0
        %v652 = vadd.f32 %v527, %v651
        %v653 = vpop.f32.mrb[0].mxu0
        %v654 = vpop.f32.mrb[0].mxu0
        %v655 = vadd.f32 %v527, %v654
        %v656 = vpop.f32.mrb[0].mxu0
        %657 = vmatprep.mubr.bf16.mxu0 0
        %658 = vmatmul.mubr.bf16.gmra.mrb[0].mxu0 %v521
        %v659 = vpop.f32.mrb[0].mxu0
        %v660 = vadd.f32 %v527, %v659
        %v661 = vpop.f32.mrb[0].mxu0
        %v662 = vpop.f32.mrb[0].mxu0
        %v663 = vadd.f32 %v527, %v662
        %v664 = vpop.f32.mrb[0].mxu0
        %665 = vmatprep.mubr.bf16.mxu0 0
        %666 = vmatmul.mubr.bf16.gmra.mrb[0].mxu0 %v522
        %v667 = vpop.f32.mrb[0].mxu0
        %v668 = vadd.f32 %v527, %v667
        %v669 = vpop.f32.mrb[0].mxu0
        %v670 = vpop.f32.mrb[0].mxu0
        %v671 = vadd.f32 %v527, %v670
        %v672 = vpop.f32.mrb[0].mxu0
        %673 = vdwg.mxu0
        %v674 = vmax.f32 %v612, 0.0
        %v675 = vmax.f32 %v615, 0.0
        %v676 = vmax.f32 %v620, 0.0
        %v677 = vmax.f32 %v623, 0.0
        %v678 = vmax.f32 %v628, 0.0
        %v679 = vmax.f32 %v631, 0.0
        %v680 = vmax.f32 %v636, 0.0
        %v681 = vmax.f32 %v639, 0.0
        %v682 = vmax.f32 %v644, 0.0
        %v683 = vmax.f32 %v647, 0.0
        %v684 = vmax.f32 %v652, 0.0
        %v685 = vmax.f32 %v655, 0.0
        %v686 = vmax.f32 %v660, 0.0
        %v687 = vmax.f32 %v663, 0.0
        %v688 = vmax.f32 %v668, 0.0
        %v689 = vmax.f32 %v671, 0.0
        %v690 = vld [vmem:[%s5] sm:$0xf]
        %v691 = vld [vmem:[%s5 + $0x4] sm:$0xf]
        %v692 = vld [vmem:[%s5 + $0x8] sm:$0xf]
        %v693 = vld [vmem:[%s5 + $0xc] sm:$0xf]
        %v694 = vld [vmem:[%s5 + $0x10] sm:$0xf]
        %v695 = vld [vmem:[%s5 + $0x14] sm:$0xf]
        %v696 = vld [vmem:[%s5 + $0x18] sm:$0xf]
        %v697 = vld [vmem:[%s5 + $0x1c] sm:$0xf]
        %v698 = vld [vmem:[%s5 + $0x20] sm:$0xf]
        %v699 = vld [vmem:[%s5 + $0x24] sm:$0xf]
        %v700 = vld [vmem:[%s5 + $0x28] sm:$0xf]
        %v701 = vld [vmem:[%s5 + $0x2c] sm:$0xf]
        %v702 = vld [vmem:[%s5 + $0x30] sm:$0xf]
        %v703 = vld [vmem:[%s5 + $0x34] sm:$0xf]
        %v704 = vld [vmem:[%s5 + $0x38] sm:$0xf]
        %v705 = vld [vmem:[%s5 + $0x3c] sm:$0xf]
        %v706 = vld [vmem:[%s6] sm:$0x1]
        %v707 = vpack.c.bf16 %v675, %v674
        %v708 = vpack.c.bf16 %v677, %v676
        %v709 = vpack.c.bf16 %v679, %v678
        %v710 = vpack.c.bf16 %v681, %v680
        %v711 = vpack.c.bf16 %v683, %v682
        %v712 = vpack.c.bf16 %v685, %v684
        %v713 = vpack.c.bf16 %v687, %v686
        %v714 = vpack.c.bf16 %v689, %v688
        %v716 = vlaneseq
        %v717 = vshrl.u32 %v716, 7
        %v718 = vsub.s32 0, %v717
        %v719 = vrot.slane %v706, %v718
        %v737 = vunpack.c.l.b16 %v690
        %v738 = vunpack.c.l.b16 %v691
        %v739 = vunpack.c.l.b16 %v692
        %v740 = vunpack.c.l.b16 %v693
        %v741 = vunpack.c.l.b16 %v694
        %v742 = vunpack.c.l.b16 %v695
        %v743 = vunpack.c.l.b16 %v696
        %v744 = vunpack.c.l.b16 %v697
        %v745 = vunpack.c.l.b16 %v698
        %v746 = vunpack.c.l.b16 %v699
        %v747 = vunpack.c.l.b16 %v700
        %v748 = vunpack.c.l.b16 %v701
        %v749 = vunpack.c.l.b16 %v702
        %v750 = vunpack.c.l.b16 %v703
        %v751 = vunpack.c.l.b16 %v704
        %v752 = vunpack.c.l.b16 %v705
        %v753 = vpack.c.b16 %v738, %v737
        %v754 = vpack.c.b16 %v740, %v739
        %v755 = vpack.c.b16 %v742, %v741
        %v756 = vpack.c.b16 %v744, %v743
        %v757 = vpack.c.b16 %v746, %v745
        %v758 = vpack.c.b16 %v748, %v747
        %v759 = vpack.c.b16 %v750, %v749
        %v760 = vpack.c.b16 %v752, %v751
        %769 = vmatprep.subr.bf16.mxu0 0
        %770 = vmatpush1.bf16.msra.mxu0 %v753
        %771 = vmatprep.subr.bf16.mxu0 0
        %772 = vmatpush1.bf16.msra.mxu0 %v754
        %773 = vmatprep.subr.bf16.mxu0 0
        %774 = vmatpush1.bf16.msra.mxu0 %v755
        %775 = vmatprep.subr.bf16.mxu0 0
        %776 = vmatpush1.bf16.msra.mxu0 %v756
        %777 = vmatprep.subr.bf16.mxu0 0
        %778 = vmatpush1.bf16.msra.mxu0 %v757
        %779 = vmatprep.subr.bf16.mxu0 0
        %780 = vmatpush1.bf16.msra.mxu0 %v758
        %781 = vmatprep.subr.bf16.mxu0 0
        %782 = vmatpush1.bf16.msra.mxu0 %v759
        %783 = vmatprep.subr.bf16.mxu0 0
        %784 = vmatpush1.bf16.msra.mxu0 %v760
        %785 = vmatprep.subr.bf16.mxu0 0
        %786 = vmatpush1.bf16.msra.mxu0 0
        %787 = vmatprep.subr.bf16.mxu0 0
        %788 = vmatpush1.bf16.msra.mxu0 0
        %789 = vmatprep.subr.bf16.mxu0 0
        %790 = vmatpush1.bf16.msra.mxu0 0
        %791 = vmatprep.subr.bf16.mxu0 0
        %792 = vmatpush1.bf16.msra.mxu0 0
        %793 = vmatprep.subr.bf16.mxu0 0
        %794 = vmatpush1.bf16.msra.mxu0 0
        %795 = vmatprep.subr.bf16.mxu0 0
        %796 = vmatpush1.bf16.msra.mxu0 0
        %797 = vmatprep.subr.bf16.mxu0 0
        %798 = vmatpush1.bf16.msra.mxu0 0
        %799 = vmatprep.subr.bf16.mxu0 0
        %800 = vmatpush1.bf16.msra.mxu0 0
        %801 = vmatprep.mubr.bf16.mxu0 0
        %802 = vmatmul.mubr.bf16.gmra.mrb[0].mxu0 %v707
        %v803 = vpop.f32.mrb[0].mxu0
        %v804 = vadd.f32 %v719, %v803
        %v805 = vpop.f32.mrb[0].mxu0
        %v806 = vpop.f32.mrb[0].mxu0
        %v807 = vadd.f32 %v719, %v806
        %v808 = vpop.f32.mrb[0].mxu0
        %809 = vmatprep.mubr.bf16.mxu0 0
        %810 = vmatmul.mubr.bf16.gmra.mrb[0].mxu0 %v708
        %v811 = vpop.f32.mrb[0].mxu0
        %v812 = vadd.f32 %v719, %v811
        %v813 = vpop.f32.mrb[0].mxu0
        %v814 = vpop.f32.mrb[0].mxu0
        %v815 = vadd.f32 %v719, %v814
        %v816 = vpop.f32.mrb[0].mxu0
        %817 = vmatprep.mubr.bf16.mxu0 0
        %818 = vmatmul.mubr.bf16.gmra.mrb[0].mxu0 %v709
        %v819 = vpop.f32.mrb[0].mxu0
        %v820 = vadd.f32 %v719, %v819
        %v821 = vpop.f32.mrb[0].mxu0
        %v822 = vpop.f32.mrb[0].mxu0
        %v823 = vadd.f32 %v719, %v822
        %v824 = vpop.f32.mrb[0].mxu0
        %825 = vmatprep.mubr.bf16.mxu0 0
        %826 = vmatmul.mubr.bf16.gmra.mrb[0].mxu0 %v710
        %v827 = vpop.f32.mrb[0].mxu0
        %v828 = vadd.f32 %v719, %v827
        %v829 = vpop.f32.mrb[0].mxu0
        %v830 = vpop.f32.mrb[0].mxu0
        %v831 = vadd.f32 %v719, %v830
        %v832 = vpop.f32.mrb[0].mxu0
        %833 = vmatprep.mubr.bf16.mxu0 0
        %834 = vmatmul.mubr.bf16.gmra.mrb[0].mxu0 %v711
        %v835 = vpop.f32.mrb[0].mxu0
        %v836 = vadd.f32 %v719, %v835
        %v837 = vpop.f32.mrb[0].mxu0
        %v838 = vpop.f32.mrb[0].mxu0
        %v839 = vadd.f32 %v719, %v838
        %v840 = vpop.f32.mrb[0].mxu0
        %841 = vmatprep.mubr.bf16.mxu0 0
        %842 = vmatmul.mubr.bf16.gmra.mrb[0].mxu0 %v712
        %v843 = vpop.f32.mrb[0].mxu0
        %v844 = vadd.f32 %v719, %v843
        %v845 = vpop.f32.mrb[0].mxu0
        %v846 = vpop.f32.mrb[0].mxu0
        %v847 = vadd.f32 %v719, %v846
        %v848 = vpop.f32.mrb[0].mxu0
        %849 = vmatprep.mubr.bf16.mxu0 0
        %850 = vmatmul.mubr.bf16.gmra.mrb[0].mxu0 %v713
        %v851 = vpop.f32.mrb[0].mxu0
        %v852 = vadd.f32 %v719, %v851
        %v853 = vpop.f32.mrb[0].mxu0
        %v854 = vpop.f32.mrb[0].mxu0
        %v855 = vadd.f32 %v719, %v854
        %v856 = vpop.f32.mrb[0].mxu0
        %857 = vmatprep.mubr.bf16.mxu0 0
        %858 = vmatmul.mubr.bf16.gmra.mrb[0].mxu0 %v714
        %v859 = vpop.f32.mrb[0].mxu0
        %v860 = vadd.f32 %v719, %v859
        %v861 = vpop.f32.mrb[0].mxu0
        %v862 = vpop.f32.mrb[0].mxu0
        %v863 = vadd.f32 %v719, %v862
        %v864 = vpop.f32.mrb[0].mxu0
        %865 = vdwg.mxu0
        %866 = vmax.xlane.f32.xlu0 %v804
        %v867 = vpop.xlane.xlu0 %866
        %868 = vmax.xlane.f32.xlu0 %v807
        %v869 = vpop.xlane.xlu0 %868
        %870 = vmax.xlane.f32.xlu0 %v812
        %v871 = vpop.xlane.xlu0 %870
        %872 = vmax.xlane.f32.xlu0 %v815
        %v873 = vpop.xlane.xlu0 %872
        %874 = vmax.xlane.f32.xlu0 %v820
        %v875 = vpop.xlane.xlu0 %874
        %876 = vmax.xlane.f32.xlu0 %v823
        %v877 = vpop.xlane.xlu0 %876
        %878 = vmax.xlane.f32.xlu0 %v828
        %v879 = vpop.xlane.xlu0 %878
        %880 = vmax.xlane.f32.xlu0 %v831
        %v881 = vpop.xlane.xlu0 %880
        %882 = vmax.xlane.f32.xlu0 %v836
        %v883 = vpop.xlane.xlu0 %882
        %884 = vmax.xlane.f32.xlu0 %v839
        %v885 = vpop.xlane.xlu0 %884
        %886 = vmax.xlane.f32.xlu0 %v844
        %v887 = vpop.xlane.xlu0 %886
        %888 = vmax.xlane.f32.xlu0 %v847
        %v889 = vpop.xlane.xlu0 %888
        %890 = vmax.xlane.f32.xlu0 %v852
        %v891 = vpop.xlane.xlu0 %890
        %892 = vmax.xlane.f32.xlu0 %v855
        %v893 = vpop.xlane.xlu0 %892
        %894 = vmax.xlane.f32.xlu0 %v860
        %v895 = vpop.xlane.xlu0 %894
        %896 = vmax.xlane.f32.xlu0 %v863
        %v897 = vpop.xlane.xlu0 %896
        %v898 = vsub.f32 %v804, %v867
        %v899 = vsub.f32 %v807, %v869
        %v900 = vsub.f32 %v812, %v871
        %v901 = vsub.f32 %v815, %v873
        %v902 = vsub.f32 %v820, %v875
        %v903 = vsub.f32 %v823, %v877
        %v904 = vsub.f32 %v828, %v879
        %v905 = vsub.f32 %v831, %v881
        %v906 = vsub.f32 %v836, %v883
        %v907 = vsub.f32 %v839, %v885
        %v908 = vsub.f32 %v844, %v887
        %v909 = vsub.f32 %v847, %v889
        %v910 = vsub.f32 %v852, %v891
        %v911 = vsub.f32 %v855, %v893
        %v912 = vsub.f32 %v860, %v895
        %v913 = vsub.f32 %v863, %v897
        %v914 = vmul.f32 %v898, 1.442695
        %v915 = vpow.pop %v914
        %v916 = vmul.f32 %v899, 1.442695
        %v917 = vpow.pop %v916
        %v918 = vmul.f32 %v900, 1.442695
        %v919 = vpow.pop %v918
        %v920 = vmul.f32 %v901, 1.442695
        %v921 = vpow.pop %v920
        %v922 = vmul.f32 %v902, 1.442695
        %v923 = vpow.pop %v922
        %v924 = vmul.f32 %v903, 1.442695
        %v925 = vpow.pop %v924
        %v926 = vmul.f32 %v904, 1.442695
        %v927 = vpow.pop %v926
        %v928 = vmul.f32 %v905, 1.442695
        %v929 = vpow.pop %v928
        %v930 = vmul.f32 %v906, 1.442695
        %v931 = vpow.pop %v930
        %v932 = vmul.f32 %v907, 1.442695
        %v933 = vpow.pop %v932
        %v934 = vmul.f32 %v908, 1.442695
        %v935 = vpow.pop %v934
        %v936 = vmul.f32 %v909, 1.442695
        %v937 = vpow.pop %v936
        %v938 = vmul.f32 %v910, 1.442695
        %v939 = vpow.pop %v938
        %v940 = vmul.f32 %v911, 1.442695
        %v941 = vpow.pop %v940
        %v942 = vmul.f32 %v912, 1.442695
        %v943 = vpow.pop %v942
        %v944 = vmul.f32 %v913, 1.442695
        %v945 = vpow.pop %v944
        %946 = vadd.xlane.f32.xlu0 %v915
        %v947 = vpop.xlane.xlu0 %946
        %948 = vadd.xlane.f32.xlu0 %v917
        %v949 = vpop.xlane.xlu0 %948
        %950 = vadd.xlane.f32.xlu0 %v919
        %v951 = vpop.xlane.xlu0 %950
        %952 = vadd.xlane.f32.xlu0 %v921
        %v953 = vpop.xlane.xlu0 %952
        %954 = vadd.xlane.f32.xlu0 %v923
        %v955 = vpop.xlane.xlu0 %954
        %956 = vadd.xlane.f32.xlu0 %v925
        %v957 = vpop.xlane.xlu0 %956
        %958 = vadd.xlane.f32.xlu0 %v927
        %v959 = vpop.xlane.xlu0 %958
        %960 = vadd.xlane.f32.xlu0 %v929
        %v961 = vpop.xlane.xlu0 %960
        %962 = vadd.xlane.f32.xlu0 %v931
        %v963 = vpop.xlane.xlu0 %962
        %964 = vadd.xlane.f32.xlu0 %v933
        %v965 = vpop.xlane.xlu0 %964
        %966 = vadd.xlane.f32.xlu0 %v935
        %v967 = vpop.xlane.xlu0 %966
        %968 = vadd.xlane.f32.xlu0 %v937
        %v969 = vpop.xlane.xlu0 %968
        %970 = vadd.xlane.f32.xlu0 %v939
        %v971 = vpop.xlane.xlu0 %970
        %972 = vadd.xlane.f32.xlu0 %v941
        %v973 = vpop.xlane.xlu0 %972
        %974 = vadd.xlane.f32.xlu0 %v943
        %v975 = vpop.xlane.xlu0 %974
        %976 = vadd.xlane.f32.xlu0 %v945
        %v977 = vpop.xlane.xlu0 %976
        %v978 = vlog2.pop %v947
        %v979 = vmul.f32 %v978, 0.6931472
        %v980 = vlog2.pop %v949
        %v981 = vmul.f32 %v980, 0.6931472
        %v982 = vlog2.pop %v951
        %v983 = vmul.f32 %v982, 0.6931472
        %v984 = vlog2.pop %v953
        %v985 = vmul.f32 %v984, 0.6931472
        %v986 = vlog2.pop %v955
        %v987 = vmul.f32 %v986, 0.6931472
        %v988 = vlog2.pop %v957
        %v989 = vmul.f32 %v988, 0.6931472
        %v990 = vlog2.pop %v959
        %v991 = vmul.f32 %v990, 0.6931472
        %v992 = vlog2.pop %v961
        %v993 = vmul.f32 %v992, 0.6931472
        %v994 = vlog2.pop %v963
        %v995 = vmul.f32 %v994, 0.6931472
        %v996 = vlog2.pop %v965
        %v997 = vmul.f32 %v996, 0.6931472
        %v998 = vlog2.pop %v967
        %v999 = vmul.f32 %v998, 0.6931472
        %v1000 = vlog2.pop %v969
        %v1001 = vmul.f32 %v1000, 0.6931472
        %v1002 = vlog2.pop %v971
        %v1003 = vmul.f32 %v1002, 0.6931472
        %v1004 = vlog2.pop %v973
        %v1005 = vmul.f32 %v1004, 0.6931472
        %v1006 = vlog2.pop %v975
        %v1007 = vmul.f32 %v1006, 0.6931472
        %v1008 = vlog2.pop %v977
        %v1009 = vmul.f32 %v1008, 0.6931472
        %v1010 = vsub.f32 %v898, %v979
        %v1011 = vsub.f32 %v899, %v981
        %v1012 = vsub.f32 %v900, %v983
        %v1013 = vsub.f32 %v901, %v985
        %v1014 = vsub.f32 %v902, %v987
        %v1015 = vsub.f32 %v903, %v989
        %v1016 = vsub.f32 %v904, %v991
        %v1017 = vsub.f32 %v905, %v993
        %v1018 = vsub.f32 %v906, %v995
        %v1019 = vsub.f32 %v907, %v997
        %v1020 = vsub.f32 %v908, %v999
        %v1021 = vsub.f32 %v909, %v1001
        %v1022 = vsub.f32 %v910, %v1003
        %v1023 = vsub.f32 %v911, %v1005
        %v1024 = vsub.f32 %v912, %v1007
        %v1025 = vsub.f32 %v913, %v1009
        %1026 = vst [vmem:[%s272] sm:$0xff] %v1010
        %1027 = vst [vmem:[%s272 + $0x8] sm:$0xff] %v1011
        %1028 = vst [vmem:[%s272 + $0x10] sm:$0xff] %v1012
        %1029 = vst [vmem:[%s272 + $0x18] sm:$0xff] %v1013
        %1030 = vst [vmem:[%s272 + $0x20] sm:$0xff] %v1014
        %1031 = vst [vmem:[%s272 + $0x28] sm:$0xff] %v1015
        %1032 = vst [vmem:[%s272 + $0x30] sm:$0xff] %v1016
        %1033 = vst [vmem:[%s272 + $0x38] sm:$0xff] %v1017
        %1034 = vst [vmem:[%s272 + $0x40] sm:$0xff] %v1018
        %1035 = vst [vmem:[%s272 + $0x48] sm:$0xff] %v1019
        %1036 = vst [vmem:[%s272 + $0x50] sm:$0xff] %v1020
        %1037 = vst [vmem:[%s272 + $0x58] sm:$0xff] %v1021
        %1038 = vst [vmem:[%s272 + $0x60] sm:$0xff] %v1022
        %1039 = vst [vmem:[%s272 + $0x68] sm:$0xff] %v1023
        %1040 = vst [vmem:[%s272 + $0x70] sm:$0xff] %v1024
        %1041 = vst [vmem:[%s272 + $0x78] sm:$0xff] %v1025
        %s1042 = sand.u32 %s181, 1
        %s1043 = scalar_lea.sflag [#allocation3], %s1042
        %s1044 = sand.u32 %s181, 1
        %s1045 = smul.addr %s1044, 128
        %s1046 = scalar_lea.vmem [#allocation2], %s1045
        // Predicated region
        $region49: #{tpu_custom_call.1} parent=47 // pred_check
          %p1047 = pneg %p191
        $region50: #{tpu_custom_call.1} parent=47 // pred_check_branch
          %1049 = sbr.rel (%p1047) target = $region52
        $region51: #{tpu_custom_call.1} parent=47 // pred_region
          %s1050 = smul.u32 16, %s21
          %s1052 = ssub.s32 2048, 2048
          %1053 = vsyncadd %s1043, %s1052
          %s1054 = smul.addr %s1050, 128
          %s1055 = scalar_lea.hbm %s7, %s1054
          %s1056 = sshll.u32 %s1046, 4
          %s1057 = int_to_ptr.vmem [resolvable:$true] %s1056
          %1062 = dma.vmem_to_hbm [thread:$0]  %s1057, 2048, %s1055, %s1043, 128, 128, 8
        $region52: #{tpu_custom_call.1} parent=47 // pred_fallthru
          _
      $region48: #{tpu_custom_call.1} parent=5 // pred_fallthru
        _
      %p1063 = scmp.le.s32.totalorder 2, %s16
      // Predicated region
      $region53: #{tpu_custom_call.1} parent=5 // pred_check
        %p1064 = pneg %p1063
      $region54: #{tpu_custom_call.1} parent=5 // pred_check_branch
        %1066 = sbr.rel (%p1064) target = $region56
      $region55: #{tpu_custom_call.1} parent=5 // pred_region
        %s1067 = ssub.s32 %s16, 2
        // Predicated region
        $region57: #{tpu_custom_call.1} parent=55 // pred_check
          %p1068 = pneg %p197
        $region58: #{tpu_custom_call.1} parent=55 // pred_check_branch
          %1070 = sbr.rel (%p1068) target = $region60
        $region59: #{tpu_custom_call.1} parent=55 // pred_region
          %s1071 = sand.u32 %s182, 1
          %s1072 = scalar_lea.sflag [#allocation3], %s1071
          %s1073 = sand.u32 %s182, 1
          %s1074 = smul.addr %s1073, 128
          %s1075 = scalar_lea.vmem [#allocation2], %s1074
          %1076 = dma.done %s1072, 2048
        $region60: #{tpu_custom_call.1} parent=55 // pred_fallthru
          _
      $region56: #{tpu_custom_call.1} parent=5 // pred_fallthru
        _
    $region6: #{tpu_custom_call.1} parent=1 // loop_footer
      %s20 = sadd.s32 1, %s16
    $region7: #{tpu_custom_call.1} parent=1 // loop_footer_branch
      %15 = sbr.rel target = $region3
    $region8: #{tpu_custom_call.1} parent=1 // loop_exit
      _
    %1077 = vsyncpa [#allocation3], 1
    %s1078 = scalar_lea.sflag [#allocation3], 1
    %1079 = vsyncpa %s1078, 1

// kernel: tpu_custom_call.1
$region0: #{tpu_custom_call.1}
  #allocation0 [shape = 'u32[]', space=smem, size = 0x4, offset = 0x4, fixed_abs, tag = 'smem constant byte address 0x4 - core index']
  #allocation1 [shape = 'u32[144,128]{1,0:T(1,128)}', space=vmem, size = 0x12000, scoped, tag = 'internal scratch']
  %s0 = inlined_call_operand.vmem [shape: bf16[256,32], index: 0, kind: input, shape index: {}]
  %s1 = inlined_call_operand.vmem [shape: bf16[32,128], index: 1, kind: input, shape index: {}]
  %s2 = inlined_call_operand.vmem [shape: f32[1,128], index: 2, kind: input, shape index: {}]
  %s3 = inlined_call_operand.vmem [shape: bf16[128,128], index: 3, kind: input, shape index: {}]
  %s4 = inlined_call_operand.vmem [shape: f32[1,128], index: 4, kind: input, shape index: {}]
  %s5 = inlined_call_operand.vmem [shape: bf16[128,128], index: 5, kind: input, shape index: {}]
  %s6 = inlined_call_operand.vmem [shape: f32[1,128], index: 6, kind: input, shape index: {}]
  %s7 = inlined_call_operand.hbm [shape: f32[256,128], index: 7, kind: output, shape index: {}]
  %s8 = sld [smem:[#allocation0]]
  $region61: #{tpu_custom_call.1} parent=0
    _
  %s10 = ssub.s32 1, %s8
  %s11 = scalar_select 0, %s10, %s8
  $region1: #{tpu_custom_call.1} parent=0
    #allocation2 [shape = 'u8[131072]{0}', space=vmem, size = 0x20000, scoped, tag = 'output window, operand 0']
    #allocation3 [shape = 's32[2]{0}', space=sflag, size = 0x8, scoped, tag = 'scoped memory for tpu_custom_call.1']
    %12 = vsyncpa [#allocation3], 0
    %s13 = scalar_lea.sflag [#allocation3], 1
    %14 = vsyncpa %s13, 0
    loop: start=0, step=1, limit=4
    $region2: #{tpu_custom_call.1} parent=1 // loop_pre_header
      _
    $region3: #{tpu_custom_call.1} parent=1 // loop_header
      %s16 = sphi 0, %s20
      %p17 = scmp.ge.s32.totalorder %s16, 4
      %s26 = sphi 0, %s28
      %s29 = sphi 0, %s26
      %s30 = sphi 0, %s29
      %s46 = sphi 0, %s30
      %s50 = sphi 0, %s50
      %s52 = sphi 0, %s50
      %s53 = sphi 0, %s52
      %s67 = sphi 0, %s53
      %s71 = sphi 0, %s71
      %s73 = sphi 0, %s71
      %s74 = sphi 0, %s73
      %s88 = sphi 0, %s74
      %s92 = sphi 0, %s92
      %s94 = sphi 0, %s92
      %s95 = sphi 0, %s94
      %s109 = sphi 0, %s95
      %s113 = sphi 0, %s113
      %s115 = sphi 0, %s113
      %s116 = sphi 0, %s115
      %s130 = sphi 0, %s116
      %s134 = sphi 0, %s134
      %s136 = sphi 0, %s134
      %s137 = sphi 0, %s136
      %s151 = sphi 0, %s137
      %s155 = sphi 0, %s155
      %s157 = sphi 0, %s155
      %s158 = sphi 0, %s157
      %s172 = sphi 0, %s158
      %s178 = sphi 0, %s180
      %s181 = sphi 0, %s178
      %s182 = sphi 0, %s181
      %s198 = sphi 0, %s182
    $region4: #{tpu_custom_call.1} parent=1 // loop_header_branch
      %19 = sbr.rel (%p17) target = $region8
    $region5: #{tpu_custom_call.1} parent=1 // loop_body
      %s21 = ssub.s32 %s16, 1
      %s22 = ssub.s32 %s16, 2
      %s23 = sadd.s32 %s16, 1
      %s24 = ssub.s32 %s16, %s23
      %p25 = scmp.eq.s32.totalorder %s24, 0
      %s27 = sadd.s32 %s26, 1
      %s28 = scalar_select %p25, %s26, %s27
      %p31 = pneg %p25
      %p32 = scmp.eq.s32.totalorder %s16, 1
      %p33 = por %p31, %p32
      %p34 = scmp.ne.s32.totalorder %s26, %s29
      %p35 = scmp.eq.s32.totalorder %s16, 0
      %p36 = por %p34, %p35
      %p37 = scmp.ne.s32.totalorder %s26, %s29
      %p38 = scmp.eq.s32.totalorder %s21, 1
      %p39 = por %p37, %p38
      %p40 = scmp.ne.s32.totalorder %s29, %s30
      %p41 = scmp.eq.s32.totalorder %s21, 0
      %p42 = por %p40, %p41
      %p43 = scmp.ne.s32.totalorder %s29, %s30
      %p44 = scmp.eq.s32.totalorder %s22, 1
      %p45 = por %p43, %p44
      %p47 = scmp.ne.s32.totalorder %s30, %s46
      %p48 = scmp.eq.s32.totalorder %s22, 0
      %p49 = por %p47, %p48
      %s51 = sadd.s32 %s50, 1
      %p54 = scmp.eq.s32.totalorder %s16, 1
      %p55 = scmp.ne.s32.totalorder %s50, %s52
      %p56 = scmp.eq.s32.totalorder %s16, 0
      %p57 = por %p55, %p56
      %p58 = scmp.ne.s32.totalorder %s50, %s52
      %p59 = scmp.eq.s32.totalorder %s21, 1
      %p60 = por %p58, %p59
      %p61 = scmp.ne.s32.totalorder %s52, %s53
      %p62 = scmp.eq.s32.totalorder %s21, 0
      %p63 = por %p61, %p62
      %p64 = scmp.ne.s32.totalorder %s52, %s53
      %p65 = scmp.eq.s32.totalorder %s22, 1
      %p66 = por %p64, %p65
      %p68 = scmp.ne.s32.totalorder %s53, %s67
      %p69 = scmp.eq.s32.totalorder %s22, 0
      %p70 = por %p68, %p69
      %s72 = sadd.s32 %s71, 1
      %p75 = scmp.eq.s32.totalorder %s16, 1
      %p76 = scmp.ne.s32.totalorder %s71, %s73
      %p77 = scmp.eq.s32.totalorder %s16, 0
      %p78 = por %p76, %p77
      %p79 = scmp.ne.s32.totalorder %s71, %s73
      %p80 = scmp.eq.s32.totalorder %s21, 1
      %p81 = por %p79, %p80
      %p82 = scmp.ne.s32.totalorder %s73, %s74
      %p83 = scmp.eq.s32.totalorder %s21, 0
      %p84 = por %p82, %p83
      %p85 = scmp.ne.s32.totalorder %s73, %s74
      %p86 = scmp.eq.s32.totalorder %s22, 1
      %p87 = por %p85, %p86
      %p89 = scmp.ne.s32.totalorder %s74, %s88
      %p90 = scmp.eq.s32.totalorder %s22, 0
      %p91 = por %p89, %p90
      %s93 = sadd.s32 %s92, 1
      %p96 = scmp.eq.s32.totalorder %s16, 1
      %p97 = scmp.ne.s32.totalorder %s92, %s94
      %p98 = scmp.eq.s32.totalorder %s16, 0
      %p99 = por %p97, %p98
      %p100 = scmp.ne.s32.totalorder %s92, %s94
      %p101 = scmp.eq.s32.totalorder %s21, 1
      %p102 = por %p100, %p101
      %p103 = scmp.ne.s32.totalorder %s94, %s95
      %p104 = scmp.eq.s32.totalorder %s21, 0
      %p105 = por %p103, %p104
      %p106 = scmp.ne.s32.totalorder %s94, %s95
      %p107 = scmp.eq.s32.totalorder %s22, 1
      %p108 = por %p106, %p107
      %p110 = scmp.ne.s32.totalorder %s95, %s109
      %p111 = scmp.eq.s32.totalorder %s22, 0
      %p112 = por %p110, %p111
      %s114 = sadd.s32 %s113, 1
      %p117 = scmp.eq.s32.totalorder %s16, 1
      %p118 = scmp.ne.s32.totalorder %s113, %s115
      %p119 = scmp.eq.s32.totalorder %s16, 0
      %p120 = por %p118, %p119
      %p121 = scmp.ne.s32.totalorder %s113, %s115
      %p122 = scmp.eq.s32.totalorder %s21, 1
      %p123 = por %p121, %p122
      %p124 = scmp.ne.s32.totalorder %s115, %s116
      %p125 = scmp.eq.s32.totalorder %s21, 0
      %p126 = por %p124, %p125
      %p127 = scmp.ne.s32.totalorder %s115, %s116
      %p128 = scmp.eq.s32.totalorder %s22, 1
      %p129 = por %p127, %p128
      %p131 = scmp.ne.s32.totalorder %s116, %s130
      %p132 = scmp.eq.s32.totalorder %s22, 0
      %p133 = por %p131, %p132
      %s135 = sadd.s32 %s134, 1
      %p138 = scmp.eq.s32.totalorder %s16, 1
      %p139 = scmp.ne.s32.totalorder %s134, %s136
      %p140 = scmp.eq.s32.totalorder %s16, 0
      %p141 = por %p139, %p140
      %p142 = scmp.ne.s32.totalorder %s134, %s136
      %p143 = scmp.eq.s32.totalorder %s21, 1
      %p144 = por %p142, %p143
      %p145 = scmp.ne.s32.totalorder %s136, %s137
      %p146 = scmp.eq.s32.totalorder %s21, 0
      %p147 = por %p145, %p146
      %p148 = scmp.ne.s32.totalorder %s136, %s137
      %p149 = scmp.eq.s32.totalorder %s22, 1
      %p150 = por %p148, %p149
      %p152 = scmp.ne.s32.totalorder %s137, %s151
      %p153 = scmp.eq.s32.totalorder %s22, 0
      %p154 = por %p152, %p153
      %s156 = sadd.s32 %s155, 1
      %p159 = scmp.eq.s32.totalorder %s16, 1
      %p160 = scmp.ne.s32.totalorder %s155, %s157
      %p161 = scmp.eq.s32.totalorder %s16, 0
      %p162 = por %p160, %p161
      %p163 = scmp.ne.s32.totalorder %s155, %s157
      %p164 = scmp.eq.s32.totalorder %s21, 1
      %p165 = por %p163, %p164
      %p166 = scmp.ne.s32.totalorder %s157, %s158
      %p167 = scmp.eq.s32.totalorder %s21, 0
      %p168 = por %p166, %p167
      %p169 = scmp.ne.s32.totalorder %s157, %s158
      %p170 = scmp.eq.s32.totalorder %s22, 1
      %p171 = por %p169, %p170
      %p173 = scmp.ne.s32.totalorder %s158, %s172
      %p174 = scmp.eq.s32.totalorder %s22, 0
      %p175 = por %p173, %p174
      %s176 = ssub.s32 %s16, %s23
      %p177 = scmp.eq.s32.totalorder %s176, 0
      %s179 = sadd.s32 %s178, 1
      %s180 = scalar_select %p177, %s178, %s179
      %p183 = pneg %p177
      %p184 = scmp.eq.s32.totalorder %s16, 1
      %p185 = por %p183, %p184
      %p186 = scmp.ne.s32.totalorder %s178, %s181
      %p187 = scmp.eq.s32.totalorder %s16, 0
      %p188 = por %p186, %p187
      %p189 = scmp.ne.s32.totalorder %s178, %s181
      %p190 = scmp.eq.s32.totalorder %s21, 1
      %p191 = por %p189, %p190
      %p192 = scmp.ne.s32.totalorder %s181, %s182
      %p193 = scmp.eq.s32.totalorder %s21, 0
      %p194 = por %p192, %p193
      %p195 = scmp.ne.s32.totalorder %s181, %s182
      %p196 = scmp.eq.s32.totalorder %s22, 1
      %p197 = por %p195, %p196
      %p199 = scmp.ne.s32.totalorder %s182, %s198
      %p200 = scmp.eq.s32.totalorder %s22, 0
      %p201 = por %p199, %p200
      %p202 = scmp.le.s32.totalorder 1, %s16
      %p203 = scmp.lt.s32.totalorder %s16, 3
      %p204 = pnand %p202, %p203
      %p205 = pneg %p204
      // Predicated region
      $region9: #{tpu_custom_call.1} parent=5 // pred_check
        _
      $region10: #{tpu_custom_call.1} parent=5 // pred_check_branch
        %207 = sbr.rel (%p204) target = $region12
      $region11: #{tpu_custom_call.1} parent=5 // pred_region
        %s208 = ssub.s32 %s16, 1
        // Predicated region
        $region13: #{tpu_custom_call.1} parent=11 // pred_check
          %p209 = pneg %p63
        $region14: #{tpu_custom_call.1} parent=11 // pred_check_branch
          %211 = sbr.rel (%p209) target = $region16
        $region15: #{tpu_custom_call.1} parent=11 // pred_region
          _
        $region16: #{tpu_custom_call.1} parent=11 // pred_fallthru
          _
        // Predicated region
        $region17: #{tpu_custom_call.1} parent=11 // pred_check
          %p212 = pneg %p84
        $region18: #{tpu_custom_call.1} parent=11 // pred_check_branch
          %214 = sbr.rel (%p212) target = $region20
        $region19: #{tpu_custom_call.1} parent=11 // pred_region
          _
        $region20: #{tpu_custom_call.1} parent=11 // pred_fallthru
          _
        // Predicated region
        $region21: #{tpu_custom_call.1} parent=11 // pred_check
          %p215 = pneg %p105
        $region22: #{tpu_custom_call.1} parent=11 // pred_check_branch
          %217 = sbr.rel (%p215) target = $region24
        $region23: #{tpu_custom_call.1} parent=11 // pred_region
          _
        $region24: #{tpu_custom_call.1} parent=11 // pred_fallthru
          _
        // Predicated region
        $region25: #{tpu_custom_call.1} parent=11 // pred_check
          %p218 = pneg %p126
        $region26: #{tpu_custom_call.1} parent=11 // pred_check_branch
          %220 = sbr.rel (%p218) target = $region28
        $region27: #{tpu_custom_call.1} parent=11 // pred_region
          _
        $region28: #{tpu_custom_call.1} parent=11 // pred_fallthru
          _
        // Predicated region
        $region29: #{tpu_custom_call.1} parent=11 // pred_check
          %p221 = pneg %p147
        $region30: #{tpu_custom_call.1} parent=11 // pred_check_branch
          %223 = sbr.rel (%p221) target = $region32
        $region31: #{tpu_custom_call.1} parent=11 // pred_region
          _
        $region32: #{tpu_custom_call.1} parent=11 // pred_fallthru
          _
        // Predicated region
        $region33: #{tpu_custom_call.1} parent=11 // pred_check
          %p224 = pneg %p168
        $region34: #{tpu_custom_call.1} parent=11 // pred_check_branch
          %226 = sbr.rel (%p224) target = $region36
        $region35: #{tpu_custom_call.1} parent=11 // pred_region
          _
        $region36: #{tpu_custom_call.1} parent=11 // pred_fallthru
          _
      $region12: #{tpu_custom_call.1} parent=5 // pred_fallthru
        _
      %p227 = scmp.lt.s32.totalorder %s16, 2
      // Predicated region
      $region37: #{tpu_custom_call.1} parent=5 // pred_check
        %p228 = pneg %p227
      $region38: #{tpu_custom_call.1} parent=5 // pred_check_branch
        %230 = sbr.rel (%p228) target = $region40
      $region39: #{tpu_custom_call.1} parent=5 // pred_region
        // Predicated region
        $region41: #{tpu_custom_call.1} parent=39 // pred_check
          %p231 = pneg %p36
        $region42: #{tpu_custom_call.1} parent=39 // pred_check_branch
          %233 = sbr.rel (%p231) target = $region44
        $region43: #{tpu_custom_call.1} parent=39 // pred_region
          %s234 = smul.u32 16, %s16
          %p235 = scmp.lt.s32.totalorder %s234, 31
          %s236 = scalar_select %p235, %s234, 31
          %s237 = smul.addr %s236, 4
          %s238 = scalar_lea.vmem %s0, %s237
          %s239 = smul.u32 16, %s16
        $region44: #{tpu_custom_call.1} parent=39 // pred_fallthru
          _
      $region40: #{tpu_custom_call.1} parent=5 // pred_fallthru
        _
      %p240 = scmp.le.s32.totalorder 1, %s16
      %p241 = scmp.lt.s32.totalorder %s16, 3
      %p242 = pnand %p240, %p241
      %p243 = pneg %p242
      // Predicated region
      $region45: #{tpu_custom_call.1} parent=5 // pred_check
        _
      $region46: #{tpu_custom_call.1} parent=5 // pred_check_branch
        %245 = sbr.rel (%p242) target = $region48
      $region47: #{tpu_custom_call.1} parent=5 // pred_region
        %s246 = ssub.s32 %s16, 1
        %s247 = smul.u32 16, %s21
        %p248 = scmp.lt.s32.totalorder %s247, 31
        %s249 = scalar_select %p248, %s247, 31
        %s250 = smul.addr %s249, 4
        %s251 = scalar_lea.vmem %s0, %s250
        %p252 = pneg %p42
        %p253 = pneg %p39
        %p254 = pneg %p63
        %p255 = pneg %p60
        %p256 = pneg %p84
        %p257 = pneg %p81
        %p258 = pneg %p105
        %p259 = pneg %p102
        %p260 = pneg %p126
        %p261 = pneg %p123
        %p262 = pneg %p147
        %p263 = pneg %p144
        %p264 = pneg %p168
        %p265 = pneg %p165
        %p266 = pneg %p194
        %p267 = pneg %p191
        %s268 = sand.u32 %s181, 1
        %s269 = scalar_lea.sflag [#allocation3], %s268
        %s270 = sand.u32 %s181, 1
        %s271 = smul.addr %s270, 128
        %s272 = scalar_lea.vmem [#allocation2], %s271
        %s273 = smul.u32 16, %s21
        %p274 = scmp.lt.s32.totalorder %s273, 31
        %s275 = scalar_select %p274, %s273, 31
        %s276 = smul.addr %s275, 4
        %s277 = scalar_lea.vmem %s0, %s276
        %s278 = smul.u32 16, %s21
        %s279 = smul.u32 16, %s21
        %v281 = vld [vmem:[%s277] sm:$0xf]
        %v282 = vld [vmem:[%s277 + $0x4] sm:$0xf]
        %v283 = vld [vmem:[%s277 + $0x8] sm:$0xf]
        %v284 = vld [vmem:[%s277 + $0xc] sm:$0xf]
        %v285 = vld [vmem:[%s277 + $0x10] sm:$0xf]
        %v286 = vld [vmem:[%s277 + $0x14] sm:$0xf]
        %v287 = vld [vmem:[%s277 + $0x18] sm:$0xf]
        %v288 = vld [vmem:[%s277 + $0x1c] sm:$0xf]
        %v289 = vld [vmem:[%s277 + $0x20] sm:$0xf]
        %v290 = vld [vmem:[%s277 + $0x24] sm:$0xf]
        %v291 = vld [vmem:[%s277 + $0x28] sm:$0xf]
        %v292 = vld [vmem:[%s277 + $0x2c] sm:$0xf]
        %v293 = vld [vmem:[%s277 + $0x30] sm:$0xf]
        %v294 = vld [vmem:[%s277 + $0x34] sm:$0xf]
        %v295 = vld [vmem:[%s277 + $0x38] sm:$0xf]
        %v296 = vld [vmem:[%s277 + $0x3c] sm:$0xf]
        %v297 = vld [vmem:[%s1] sm:$0xf]
        %v298 = vld [vmem:[%s1 + $0x4] sm:$0xf]
        %v299 = vld [vmem:[%s1 + $0x8] sm:$0xf]
        %v300 = vld [vmem:[%s1 + $0xc] sm:$0xf]
        %v301 = vld [vmem:[%s2] sm:$0x1]
        %v303 = vlaneseq
        %v304 = vshrl.u32 %v303, 7
        %v305 = vsub.s32 0, %v304
        %v306 = vrot.slane %v301, %v305
        %v324 = vunpack.c.l.b16 %v281
        %v325 = vunpack.c.l.b16 %v282
        %v326 = vunpack.c.l.b16 %v283
        %v327 = vunpack.c.l.b16 %v284
        %v328 = vunpack.c.l.b16 %v285
        %v329 = vunpack.c.l.b16 %v286
        %v330 = vunpack.c.l.b16 %v287
        %v331 = vunpack.c.l.b16 %v288
        %v332 = vunpack.c.l.b16 %v289
        %v333 = vunpack.c.l.b16 %v290
        %v334 = vunpack.c.l.b16 %v291
        %v335 = vunpack.c.l.b16 %v292
        %v336 = vunpack.c.l.b16 %v293
        %v337 = vunpack.c.l.b16 %v294
        %v338 = vunpack.c.l.b16 %v295
        %v339 = vunpack.c.l.b16 %v296
        %v340 = vpack.c.b16 %v325, %v324
        %v341 = vpack.c.b16 %v327, %v326
        %v342 = vpack.c.b16 %v329, %v328
        %v343 = vpack.c.b16 %v331, %v330
        %v344 = vpack.c.b16 %v333, %v332
        %v345 = vpack.c.b16 %v335, %v334
        %v346 = vpack.c.b16 %v337, %v336
        %v347 = vpack.c.b16 %v339, %v338
        %v352 = vunpack.c.l.b16 %v297
        %v353 = vunpack.c.l.b16 %v298
        %v354 = vunpack.c.l.b16 %v299
        %v355 = vunpack.c.l.b16 %v300
        %v356 = vpack.c.b16 %v353, %v352
        %v357 = vpack.c.b16 %v355, %v354
        %vm360 = vcmask 261120
        %v362 = vsel %vm360, %v340, 0
        %v365 = vsel %vm360, %v341, 0
        %v368 = vsel %vm360, %v342, 0
        %v371 = vsel %vm360, %v343, 0
        %v374 = vsel %vm360, %v344, 0
        %v377 = vsel %vm360, %v345, 0
        %v380 = vsel %vm360, %v346, 0
        %v383 = vsel %vm360, %v347, 0
        %385 = vmatprep.subr.bf16.mxu0 0
        %386 = vmatpush1.bf16.msra.mxu0 %v356
        %387 = vmatprep.subr.bf16.mxu0 0
        %388 = vmatpush1.bf16.msra.mxu0 %v357
        %389 = vmatprep.subr.bf16.mxu0 0
        %390 = vmatpush1.bf16.msra.mxu0 0
        %391 = vmatprep.subr.bf16.mxu0 0
        %392 = vmatpush1.bf16.msra.mxu0 0
        %393 = vmatprep.subr.bf16.mxu0 0
        %394 = vmatpush1.bf16.msra.mxu0 0
        %395 = vmatprep.subr.bf16.mxu0 0
        %396 = vmatpush1.bf16.msra.mxu0 0
        %397 = vmatprep.subr.bf16.mxu0 0
        %398 = vmatpush1.bf16.msra.mxu0 0
        %399 = vmatprep.subr.bf16.mxu0 0
        %400 = vmatpush1.bf16.msra.mxu0 0
        %401 = vmatprep.subr.bf16.mxu0 0
        %402 = vmatpush1.bf16.msra.mxu0 0
        %403 = vmatprep.subr.bf16.mxu0 0
        %404 = vmatpush1.bf16.msra.mxu0 0
        %405 = vmatprep.subr.bf16.mxu0 0
        %406 = vmatpush1.bf16.msra.mxu0 0
        %407 = vmatprep.subr.bf16.mxu0 0
        %408 = vmatpush1.bf16.msra.mxu0 0
        %409 = vmatprep.subr.bf16.mxu0 0
        %410 = vmatpush1.bf16.msra.mxu0 0
        %411 = vmatprep.subr.bf16.mxu0 0
        %412 = vmatpush1.bf16.msra.mxu0 0
        %413 = vmatprep.subr.bf16.mxu0 0
        %414 = vmatpush1.bf16.msra.mxu0 0
        %415 = vmatprep.subr.bf16.mxu0 0
        %416 = vmatpush1.bf16.msra.mxu0 0
        %417 = vmatprep.mubr.bf16.mxu0 0
        %418 = vmatmul.mubr.bf16.gmra.mrb[0].mxu0 %v362
        %v419 = vpop.f32.mrb[0].mxu0
        %v420 = vadd.f32 %v306, %v419
        %v421 = vpop.f32.mrb[0].mxu0
        %v422 = vpop.f32.mrb[0].mxu0
        %v423 = vadd.f32 %v306, %v422
        %v424 = vpop.f32.mrb[0].mxu0
        %425 = vmatprep.mubr.bf16.mxu0 0
        %426 = vmatmul.mubr.bf16.gmra.mrb[0].mxu0 %v365
        %v427 = vpop.f32.mrb[0].mxu0
        %v428 = vadd.f32 %v306, %v427
        %v429 = vpop.f32.mrb[0].mxu0
        %v430 = vpop.f32.mrb[0].mxu0
        %v431 = vadd.f32 %v306, %v430
        %v432 = vpop.f32.mrb[0].mxu0
        %433 = vmatprep.mubr.bf16.mxu0 0
        %434 = vmatmul.mubr.bf16.gmra.mrb[0].mxu0 %v368
        %v435 = vpop.f32.mrb[0].mxu0
        %v436 = vadd.f32 %v306, %v435
        %v437 = vpop.f32.mrb[0].mxu0
        %v438 = vpop.f32.mrb[0].mxu0
        %v439 = vadd.f32 %v306, %v438
        %v440 = vpop.f32.mrb[0].mxu0
        %441 = vmatprep.mubr.bf16.mxu0 0
        %442 = vmatmul.mubr.bf16.gmra.mrb[0].mxu0 %v371
        %v443 = vpop.f32.mrb[0].mxu0
        %v444 = vadd.f32 %v306, %v443
        %v445 = vpop.f32.mrb[0].mxu0
        %v446 = vpop.f32.mrb[0].mxu0
        %v447 = vadd.f32 %v306, %v446
        %v448 = vpop.f32.mrb[0].mxu0
        %449 = vmatprep.mubr.bf16.mxu0 0
        %450 = vmatmul.mubr.bf16.gmra.mrb[0].mxu0 %v374
        %v451 = vpop.f32.mrb[0].mxu0
        %v452 = vadd.f32 %v306, %v451
        %v453 = vpop.f32.mrb[0].mxu0
        %v454 = vpop.f32.mrb[0].mxu0
        %v455 = vadd.f32 %v306, %v454
        %v456 = vpop.f32.mrb[0].mxu0
        %457 = vmatprep.mubr.bf16.mxu0 0
        %458 = vmatmul.mubr.bf16.gmra.mrb[0].mxu0 %v377
        %v459 = vpop.f32.mrb[0].mxu0
        %v460 = vadd.f32 %v306, %v459
        %v461 = vpop.f32.mrb[0].mxu0
        %v462 = vpop.f32.mrb[0].mxu0
        %v463 = vadd.f32 %v306, %v462
        %v464 = vpop.f32.mrb[0].mxu0
        %465 = vmatprep.mubr.bf16.mxu0 0
        %466 = vmatmul.mubr.bf16.gmra.mrb[0].mxu0 %v380
        %v467 = vpop.f32.mrb[0].mxu0
        %v468 = vadd.f32 %v306, %v467
        %v469 = vpop.f32.mrb[0].mxu0
        %v470 = vpop.f32.mrb[0].mxu0
        %v471 = vadd.f32 %v306, %v470
        %v472 = vpop.f32.mrb[0].mxu0
        %473 = vmatprep.mubr.bf16.mxu0 0
        %474 = vmatmul.mubr.bf16.gmra.mrb[0].mxu0 %v383
        %v475 = vpop.f32.mrb[0].mxu0
        %v476 = vadd.f32 %v306, %v475
        %v477 = vpop.f32.mrb[0].mxu0
        %v478 = vpop.f32.mrb[0].mxu0
        %v479 = vadd.f32 %v306, %v478
        %v480 = vpop.f32.mrb[0].mxu0
        %481 = vdwg.mxu0
        %v482 = vmax.f32 %v420, 0.0
        %v483 = vmax.f32 %v423, 0.0
        %v484 = vmax.f32 %v428, 0.0
        %v485 = vmax.f32 %v431, 0.0
        %v486 = vmax.f32 %v436, 0.0
        %v487 = vmax.f32 %v439, 0.0
        %v488 = vmax.f32 %v444, 0.0
        %v489 = vmax.f32 %v447, 0.0
        %v490 = vmax.f32 %v452, 0.0
        %v491 = vmax.f32 %v455, 0.0
        %v492 = vmax.f32 %v460, 0.0
        %v493 = vmax.f32 %v463, 0.0
        %v494 = vmax.f32 %v468, 0.0
        %v495 = vmax.f32 %v471, 0.0
        %v496 = vmax.f32 %v476, 0.0
        %v497 = vmax.f32 %v479, 0.0
        %v498 = vld [vmem:[%s3] sm:$0xf]
        %v499 = vld [vmem:[%s3 + $0x4] sm:$0xf]
        %v500 = vld [vmem:[%s3 + $0x8] sm:$0xf]
        %v501 = vld [vmem:[%s3 + $0xc] sm:$0xf]
        %v502 = vld [vmem:[%s3 + $0x10] sm:$0xf]
        %v503 = vld [vmem:[%s3 + $0x14] sm:$0xf]
        %v504 = vld [vmem:[%s3 + $0x18] sm:$0xf]
        %v505 = vld [vmem:[%s3 + $0x1c] sm:$0xf]
        %v506 = vld [vmem:[%s3 + $0x20] sm:$0xf]
        %v507 = vld [vmem:[%s3 + $0x24] sm:$0xf]
        %v508 = vld [vmem:[%s3 + $0x28] sm:$0xf]
        %v509 = vld [vmem:[%s3 + $0x2c] sm:$0xf]
        %v510 = vld [vmem:[%s3 + $0x30] sm:$0xf]
        %v511 = vld [vmem:[%s3 + $0x34] sm:$0xf]
        %v512 = vld [vmem:[%s3 + $0x38] sm:$0xf]
        %v513 = vld [vmem:[%s3 + $0x3c] sm:$0xf]
        %v514 = vld [vmem:[%s4] sm:$0x1]
        %v515 = vpack.c.bf16 %v483, %v482
        %v516 = vpack.c.bf16 %v485, %v484
        %v517 = vpack.c.bf16 %v487, %v486
        %v518 = vpack.c.bf16 %v489, %v488
        %v519 = vpack.c.bf16 %v491, %v490
        %v520 = vpack.c.bf16 %v493, %v492
        %v521 = vpack.c.bf16 %v495, %v494
        %v522 = vpack.c.bf16 %v497, %v496
        %v524 = vlaneseq
        %v525 = vshrl.u32 %v524, 7
        %v526 = vsub.s32 0, %v525
        %v527 = vrot.slane %v514, %v526
        %v545 = vunpack.c.l.b16 %v498
        %v546 = vunpack.c.l.b16 %v499
        %v547 = vunpack.c.l.b16 %v500
        %v548 = vunpack.c.l.b16 %v501
        %v549 = vunpack.c.l.b16 %v502
        %v550 = vunpack.c.l.b16 %v503
        %v551 = vunpack.c.l.b16 %v504
        %v552 = vunpack.c.l.b16 %v505
        %v553 = vunpack.c.l.b16 %v506
        %v554 = vunpack.c.l.b16 %v507
        %v555 = vunpack.c.l.b16 %v508
        %v556 = vunpack.c.l.b16 %v509
        %v557 = vunpack.c.l.b16 %v510
        %v558 = vunpack.c.l.b16 %v511
        %v559 = vunpack.c.l.b16 %v512
        %v560 = vunpack.c.l.b16 %v513
        %v561 = vpack.c.b16 %v546, %v545
        %v562 = vpack.c.b16 %v548, %v547
        %v563 = vpack.c.b16 %v550, %v549
        %v564 = vpack.c.b16 %v552, %v551
        %v565 = vpack.c.b16 %v554, %v553
        %v566 = vpack.c.b16 %v556, %v555
        %v567 = vpack.c.b16 %v558, %v557
        %v568 = vpack.c.b16 %v560, %v559
        %577 = vmatprep.subr.bf16.mxu0 0
        %578 = vmatpush1.bf16.msra.mxu0 %v561
        %579 = vmatprep.subr.bf16.mxu0 0
        %580 = vmatpush1.bf16.msra.mxu0 %v562
        %581 = vmatprep.subr.bf16.mxu0 0
        %582 = vmatpush1.bf16.msra.mxu0 %v563
        %583 = vmatprep.subr.bf16.mxu0 0
        %584 = vmatpush1.bf16.msra.mxu0 %v564
        %585 = vmatprep.subr.bf16.mxu0 0
        %586 = vmatpush1.bf16.msra.mxu0 %v565
        %587 = vmatprep.subr.bf16.mxu0 0
        %588 = vmatpush1.bf16.msra.mxu0 %v566
        %589 = vmatprep.subr.bf16.mxu0 0
        %590 = vmatpush1.bf16.msra.mxu0 %v567
        %591 = vmatprep.subr.bf16.mxu0 0
        %592 = vmatpush1.bf16.msra.mxu0 %v568
        %593 = vmatprep.subr.bf16.mxu0 0
        %594 = vmatpush1.bf16.msra.mxu0 0
        %595 = vmatprep.subr.bf16.mxu0 0
        %596 = vmatpush1.bf16.msra.mxu0 0
        %597 = vmatprep.subr.bf16.mxu0 0
        %598 = vmatpush1.bf16.msra.mxu0 0
        %599 = vmatprep.subr.bf16.mxu0 0
        %600 = vmatpush1.bf16.msra.mxu0 0
        %601 = vmatprep.subr.bf16.mxu0 0
        %602 = vmatpush1.bf16.msra.mxu0 0
        %603 = vmatprep.subr.bf16.mxu0 0
        %604 = vmatpush1.bf16.msra.mxu0 0
        %605 = vmatprep.subr.bf16.mxu0 0
        %606 = vmatpush1.bf16.msra.mxu0 0
        %607 = vmatprep.subr.bf16.mxu0 0
        %608 = vmatpush1.bf16.msra.mxu0 0
        %609 = vmatprep.mubr.bf16.mxu0 0
        %610 = vmatmul.mubr.bf16.gmra.mrb[0].mxu0 %v515
        %v611 = vpop.f32.mrb[0].mxu0
        %v612 = vadd.f32 %v527, %v611
        %v613 = vpop.f32.mrb[0].mxu0
        %v614 = vpop.f32.mrb[0].mxu0
        %v615 = vadd.f32 %v527, %v614
        %v616 = vpop.f32.mrb[0].mxu0
        %617 = vmatprep.mubr.bf16.mxu0 0
        %618 = vmatmul.mubr.bf16.gmra.mrb[0].mxu0 %v516
        %v619 = vpop.f32.mrb[0].mxu0
        %v620 = vadd.f32 %v527, %v619
        %v621 = vpop.f32.mrb[0].mxu0
        %v622 = vpop.f32.mrb[0].mxu0
        %v623 = vadd.f32 %v527, %v622
        %v624 = vpop.f32.mrb[0].mxu0
        %625 = vmatprep.mubr.bf16.mxu0 0
        %626 = vmatmul.mubr.bf16.gmra.mrb[0].mxu0 %v517
        %v627 = vpop.f32.mrb[0].mxu0
        %v628 = vadd.f32 %v527, %v627
        %v629 = vpop.f32.mrb[0].mxu0
        %v630 = vpop.f32.mrb[0].mxu0
        %v631 = vadd.f32 %v527, %v630
        %v632 = vpop.f32.mrb[0].mxu0
        %633 = vmatprep.mubr.bf16.mxu0 0
        %634 = vmatmul.mubr.bf16.gmra.mrb[0].mxu0 %v518
        %v635 = vpop.f32.mrb[0].mxu0
        %v636 = vadd.f32 %v527, %v635
        %v637 = vpop.f32.mrb[0].mxu0
        %v638 = vpop.f32.mrb[0].mxu0
        %v639 = vadd.f32 %v527, %v638
        %v640 = vpop.f32.mrb[0].mxu0
        %641 = vmatprep.mubr.bf16.mxu0 0
        %642 = vmatmul.mubr.bf16.gmra.mrb[0].mxu0 %v519
        %v643 = vpop.f32.mrb[0].mxu0
        %v644 = vadd.f32 %v527, %v643
        %v645 = vpop.f32.mrb[0].mxu0
        %v646 = vpop.f32.mrb[0].mxu0
        %v647 = vadd.f32 %v527, %v646
        %v648 = vpop.f32.mrb[0].mxu0
        %649 = vmatprep.mubr.bf16.mxu0 0
        %650 = vmatmul.mubr.bf16.gmra.mrb[0].mxu0 %v520
        %v651 = vpop.f32.mrb[0].mxu0
        %v652 = vadd.f32 %v527, %v651
        %v653 = vpop.f32.mrb[0].mxu0
        %v654 = vpop.f32.mrb[0].mxu0
        %v655 = vadd.f32 %v527, %v654
        %v656 = vpop.f32.mrb[0].mxu0
        %657 = vmatprep.mubr.bf16.mxu0 0
        %658 = vmatmul.mubr.bf16.gmra.mrb[0].mxu0 %v521
        %v659 = vpop.f32.mrb[0].mxu0
        %v660 = vadd.f32 %v527, %v659
        %v661 = vpop.f32.mrb[0].mxu0
        %v662 = vpop.f32.mrb[0].mxu0
        %v663 = vadd.f32 %v527, %v662
        %v664 = vpop.f32.mrb[0].mxu0
        %665 = vmatprep.mubr.bf16.mxu0 0
        %666 = vmatmul.mubr.bf16.gmra.mrb[0].mxu0 %v522
        %v667 = vpop.f32.mrb[0].mxu0
        %v668 = vadd.f32 %v527, %v667
        %v669 = vpop.f32.mrb[0].mxu0
        %v670 = vpop.f32.mrb[0].mxu0
        %v671 = vadd.f32 %v527, %v670
        %v672 = vpop.f32.mrb[0].mxu0
        %673 = vdwg.mxu0
        %v674 = vmax.f32 %v612, 0.0
        %v675 = vmax.f32 %v615, 0.0
        %v676 = vmax.f32 %v620, 0.0
        %v677 = vmax.f32 %v623, 0.0
        %v678 = vmax.f32 %v628, 0.0
        %v679 = vmax.f32 %v631, 0.0
        %v680 = vmax.f32 %v636, 0.0
        %v681 = vmax.f32 %v639, 0.0
        %v682 = vmax.f32 %v644, 0.0
        %v683 = vmax.f32 %v647, 0.0
        %v684 = vmax.f32 %v652, 0.0
        %v685 = vmax.f32 %v655, 0.0
        %v686 = vmax.f32 %v660, 0.0
        %v687 = vmax.f32 %v663, 0.0
        %v688 = vmax.f32 %v668, 0.0
        %v689 = vmax.f32 %v671, 0.0
        %v690 = vld [vmem:[%s5] sm:$0xf]
        %v691 = vld [vmem:[%s5 + $0x4] sm:$0xf]
        %v692 = vld [vmem:[%s5 + $0x8] sm:$0xf]
        %v693 = vld [vmem:[%s5 + $0xc] sm:$0xf]
        %v694 = vld [vmem:[%s5 + $0x10] sm:$0xf]
        %v695 = vld [vmem:[%s5 + $0x14] sm:$0xf]
        %v696 = vld [vmem:[%s5 + $0x18] sm:$0xf]
        %v697 = vld [vmem:[%s5 + $0x1c] sm:$0xf]
        %v698 = vld [vmem:[%s5 + $0x20] sm:$0xf]
        %v699 = vld [vmem:[%s5 + $0x24] sm:$0xf]
        %v700 = vld [vmem:[%s5 + $0x28] sm:$0xf]
        %v701 = vld [vmem:[%s5 + $0x2c] sm:$0xf]
        %v702 = vld [vmem:[%s5 + $0x30] sm:$0xf]
        %v703 = vld [vmem:[%s5 + $0x34] sm:$0xf]
        %v704 = vld [vmem:[%s5 + $0x38] sm:$0xf]
        %v705 = vld [vmem:[%s5 + $0x3c] sm:$0xf]
        %v706 = vld [vmem:[%s6] sm:$0x1]
        %v707 = vpack.c.bf16 %v675, %v674
        %v708 = vpack.c.bf16 %v677, %v676
        %v709 = vpack.c.bf16 %v679, %v678
        %v710 = vpack.c.bf16 %v681, %v680
        %v711 = vpack.c.bf16 %v683, %v682
        %v712 = vpack.c.bf16 %v685, %v684
        %v713 = vpack.c.bf16 %v687, %v686
        %v714 = vpack.c.bf16 %v689, %v688
        %v716 = vlaneseq
        %v717 = vshrl.u32 %v716, 7
        %v718 = vsub.s32 0, %v717
        %v719 = vrot.slane %v706, %v718
        %v737 = vunpack.c.l.b16 %v690
        %v738 = vunpack.c.l.b16 %v691
        %v739 = vunpack.c.l.b16 %v692
        %v740 = vunpack.c.l.b16 %v693
        %v741 = vunpack.c.l.b16 %v694
        %v742 = vunpack.c.l.b16 %v695
        %v743 = vunpack.c.l.b16 %v696
        %v744 = vunpack.c.l.b16 %v697
        %v745 = vunpack.c.l.b16 %v698
        %v746 = vunpack.c.l.b16 %v699
        %v747 = vunpack.c.l.b16 %v700
        %v748 = vunpack.c.l.b16 %v701
        %v749 = vunpack.c.l.b16 %v702
        %v750 = vunpack.c.l.b16 %v703
        %v751 = vunpack.c.l.b16 %v704
        %v752 = vunpack.c.l.b16 %v705
        %v753 = vpack.c.b16 %v738, %v737
        %v754 = vpack.c.b16 %v740, %v739
        %v755 = vpack.c.b16 %v742, %v741
        %v756 = vpack.c.b16 %v744, %v743
        %v757 = vpack.c.b16 %v746, %v745
        %v758 = vpack.c.b16 %v748, %v747
        %v759 = vpack.c.b16 %v750, %v749
        %v760 = vpack.c.b16 %v752, %v751
        %769 = vmatprep.subr.bf16.mxu0 0
        %770 = vmatpush1.bf16.msra.mxu0 %v753
        %771 = vmatprep.subr.bf16.mxu0 0
        %772 = vmatpush1.bf16.msra.mxu0 %v754
        %773 = vmatprep.subr.bf16.mxu0 0
        %774 = vmatpush1.bf16.msra.mxu0 %v755
        %775 = vmatprep.subr.bf16.mxu0 0
        %776 = vmatpush1.bf16.msra.mxu0 %v756
        %777 = vmatprep.subr.bf16.mxu0 0
        %778 = vmatpush1.bf16.msra.mxu0 %v757
        %779 = vmatprep.subr.bf16.mxu0 0
        %780 = vmatpush1.bf16.msra.mxu0 %v758
        %781 = vmatprep.subr.bf16.mxu0 0
        %782 = vmatpush1.bf16.msra.mxu0 %v759
        %783 = vmatprep.subr.bf16.mxu0 0
        %784 = vmatpush1.bf16.msra.mxu0 %v760
        %785 = vmatprep.subr.bf16.mxu0 0
        %786 = vmatpush1.bf16.msra.mxu0 0
        %787 = vmatprep.subr.bf16.mxu0 0
        %788 = vmatpush1.bf16.msra.mxu0 0
        %789 = vmatprep.subr.bf16.mxu0 0
        %790 = vmatpush1.bf16.msra.mxu0 0
        %791 = vmatprep.subr.bf16.mxu0 0
        %792 = vmatpush1.bf16.msra.mxu0 0
        %793 = vmatprep.subr.bf16.mxu0 0
        %794 = vmatpush1.bf16.msra.mxu0 0
        %795 = vmatprep.subr.bf16.mxu0 0
        %796 = vmatpush1.bf16.msra.mxu0 0
        %797 = vmatprep.subr.bf16.mxu0 0
        %798 = vmatpush1.bf16.msra.mxu0 0
        %799 = vmatprep.subr.bf16.mxu0 0
        %800 = vmatpush1.bf16.msra.mxu0 0
        %801 = vmatprep.mubr.bf16.mxu0 0
        %802 = vmatmul.mubr.bf16.gmra.mrb[0].mxu0 %v707
        %v803 = vpop.f32.mrb[0].mxu0
        %v804 = vadd.f32 %v719, %v803
        %v805 = vpop.f32.mrb[0].mxu0
        %v806 = vpop.f32.mrb[0].mxu0
        %v807 = vadd.f32 %v719, %v806
        %v808 = vpop.f32.mrb[0].mxu0
        %809 = vmatprep.mubr.bf16.mxu0 0
        %810 = vmatmul.mubr.bf16.gmra.mrb[0].mxu0 %v708
        %v811 = vpop.f32.mrb[0].mxu0
        %v812 = vadd.f32 %v719, %v811
        %v813 = vpop.f32.mrb[0].mxu0
        %v814 = vpop.f32.mrb[0].mxu0
        %v815 = vadd.f32 %v719, %v814
        %v816 = vpop.f32.mrb[0].mxu0
        %817 = vmatprep.mubr.bf16.mxu0 0
        %818 = vmatmul.mubr.bf16.gmra.mrb[0].mxu0 %v709
        %v819 = vpop.f32.mrb[0].mxu0
        %v820 = vadd.f32 %v719, %v819
        %v821 = vpop.f32.mrb[0].mxu0
        %v822 = vpop.f32.mrb[0].mxu0
        %v823 = vadd.f32 %v719, %v822
        %v824 = vpop.f32.mrb[0].mxu0
        %825 = vmatprep.mubr.bf16.mxu0 0
        %826 = vmatmul.mubr.bf16.gmra.mrb[0].mxu0 %v710
        %v827 = vpop.f32.mrb[0].mxu0
        %v828 = vadd.f32 %v719, %v827
        %v829 = vpop.f32.mrb[0].mxu0
        %v830 = vpop.f32.mrb[0].mxu0
        %v831 = vadd.f32 %v719, %v830
        %v832 = vpop.f32.mrb[0].mxu0
        %833 = vmatprep.mubr.bf16.mxu0 0
        %834 = vmatmul.mubr.bf16.gmra.mrb[0].mxu0 %v711
        %v835 = vpop.f32.mrb[0].mxu0
        %v836 = vadd.f32 %v719, %v835
        %v837 = vpop.f32.mrb[0].mxu0
        %v838 = vpop.f32.mrb[0].mxu0
        %v839 = vadd.f32 %v719, %v838
        %v840 = vpop.f32.mrb[0].mxu0
        %841 = vmatprep.mubr.bf16.mxu0 0
        %842 = vmatmul.mubr.bf16.gmra.mrb[0].mxu0 %v712
        %v843 = vpop.f32.mrb[0].mxu0
        %v844 = vadd.f32 %v719, %v843
        %v845 = vpop.f32.mrb[0].mxu0
        %v846 = vpop.f32.mrb[0].mxu0
        %v847 = vadd.f32 %v719, %v846
        %v848 = vpop.f32.mrb[0].mxu0
        %849 = vmatprep.mubr.bf16.mxu0 0
        %850 = vmatmul.mubr.bf16.gmra.mrb[0].mxu0 %v713
        %v851 = vpop.f32.mrb[0].mxu0
        %v852 = vadd.f32 %v719, %v851
        %v853 = vpop.f32.mrb[0].mxu0
        %v854 = vpop.f32.mrb[0].mxu0
        %v855 = vadd.f32 %v719, %v854
        %v856 = vpop.f32.mrb[0].mxu0
        %857 = vmatprep.mubr.bf16.mxu0 0
        %858 = vmatmul.mubr.bf16.gmra.mrb[0].mxu0 %v714
        %v859 = vpop.f32.mrb[0].mxu0
        %v860 = vadd.f32 %v719, %v859
        %v861 = vpop.f32.mrb[0].mxu0
        %v862 = vpop.f32.mrb[0].mxu0
        %v863 = vadd.f32 %v719, %v862
        %v864 = vpop.f32.mrb[0].mxu0
        %865 = vdwg.mxu0
        %866 = vmax.xlane.f32.xlu0 %v804
        %v867 = vpop.xlane.xlu0 %866
        %868 = vmax.xlane.f32.xlu0 %v807
        %v869 = vpop.xlane.xlu0 %868
        %870 = vmax.xlane.f32.xlu0 %v812
        %v871 = vpop.xlane.xlu0 %870
        %872 = vmax.xlane.f32.xlu0 %v815
        %v873 = vpop.xlane.xlu0 %872
        %874 = vmax.xlane.f32.xlu0 %v820
        %v875 = vpop.xlane.xlu0 %874
        %876 = vmax.xlane.f32.xlu0 %v823
        %v877 = vpop.xlane.xlu0 %876
        %878 = vmax.xlane.f32.xlu0 %v828
        %v879 = vpop.xlane.xlu0 %878
        %880 = vmax.xlane.f32.xlu0 %v831
        %v881 = vpop.xlane.xlu0 %880
        %882 = vmax.xlane.f32.xlu0 %v836
        %v883 = vpop.xlane.xlu0 %882
        %884 = vmax.xlane.f32.xlu0 %v839
        %v885 = vpop.xlane.xlu0 %884
        %886 = vmax.xlane.f32.xlu0 %v844
        %v887 = vpop.xlane.xlu0 %886
        %888 = vmax.xlane.f32.xlu0 %v847
        %v889 = vpop.xlane.xlu0 %888
        %890 = vmax.xlane.f32.xlu0 %v852
        %v891 = vpop.xlane.xlu0 %890
        %892 = vmax.xlane.f32.xlu0 %v855
        %v893 = vpop.xlane.xlu0 %892
        %894 = vmax.xlane.f32.xlu0 %v860
        %v895 = vpop.xlane.xlu0 %894
        %896 = vmax.xlane.f32.xlu0 %v863
        %v897 = vpop.xlane.xlu0 %896
        %v898 = vsub.f32 %v804, %v867
        %v899 = vsub.f32 %v807, %v869
        %v900 = vsub.f32 %v812, %v871
        %v901 = vsub.f32 %v815, %v873
        %v902 = vsub.f32 %v820, %v875
        %v903 = vsub.f32 %v823, %v877
        %v904 = vsub.f32 %v828, %v879
        %v905 = vsub.f32 %v831, %v881
        %v906 = vsub.f32 %v836, %v883
        %v907 = vsub.f32 %v839, %v885
        %v908 = vsub.f32 %v844, %v887
        %v909 = vsub.f32 %v847, %v889
        %v910 = vsub.f32 %v852, %v891
        %v911 = vsub.f32 %v855, %v893
        %v912 = vsub.f32 %v860, %v895
        %v913 = vsub.f32 %v863, %v897
        %v914 = vmul.f32 %v898, 1.442695
        %v915 = vpow.pop %v914
        %v916 = vmul.f32 %v899, 1.442695
        %v917 = vpow.pop %v916
        %v918 = vmul.f32 %v900, 1.442695
        %v919 = vpow.pop %v918
        %v920 = vmul.f32 %v901, 1.442695
        %v921 = vpow.pop %v920
        %v922 = vmul.f32 %v902, 1.442695
        %v923 = vpow.pop %v922
        %v924 = vmul.f32 %v903, 1.442695
        %v925 = vpow.pop %v924
        %v926 = vmul.f32 %v904, 1.442695
        %v927 = vpow.pop %v926
        %v928 = vmul.f32 %v905, 1.442695
        %v929 = vpow.pop %v928
        %v930 = vmul.f32 %v906, 1.442695
        %v931 = vpow.pop %v930
        %v932 = vmul.f32 %v907, 1.442695
        %v933 = vpow.pop %v932
        %v934 = vmul.f32 %v908, 1.442695
        %v935 = vpow.pop %v934
        %v936 = vmul.f32 %v909, 1.442695
        %v937 = vpow.pop %v936
        %v938 = vmul.f32 %v910, 1.442695
        %v939 = vpow.pop %v938
        %v940 = vmul.f32 %v911, 1.442695
        %v941 = vpow.pop %v940
        %v942 = vmul.f32 %v912, 1.442695
        %v943 = vpow.pop %v942
        %v944 = vmul.f32 %v913, 1.442695
        %v945 = vpow.pop %v944
        %946 = vadd.xlane.f32.xlu0 %v915
        %v947 = vpop.xlane.xlu0 %946
        %948 = vadd.xlane.f32.xlu0 %v917
        %v949 = vpop.xlane.xlu0 %948
        %950 = vadd.xlane.f32.xlu0 %v919
        %v951 = vpop.xlane.xlu0 %950
        %952 = vadd.xlane.f32.xlu0 %v921
        %v953 = vpop.xlane.xlu0 %952
        %954 = vadd.xlane.f32.xlu0 %v923
        %v955 = vpop.xlane.xlu0 %954
        %956 = vadd.xlane.f32.xlu0 %v925
        %v957 = vpop.xlane.xlu0 %956
        %958 = vadd.xlane.f32.xlu0 %v927
        %v959 = vpop.xlane.xlu0 %958
        %960 = vadd.xlane.f32.xlu0 %v929
        %v961 = vpop.xlane.xlu0 %960
        %962 = vadd.xlane.f32.xlu0 %v931
        %v963 = vpop.xlane.xlu0 %962
        %964 = vadd.xlane.f32.xlu0 %v933
        %v965 = vpop.xlane.xlu0 %964
        %966 = vadd.xlane.f32.xlu0 %v935
        %v967 = vpop.xlane.xlu0 %966
        %968 = vadd.xlane.f32.xlu0 %v937
        %v969 = vpop.xlane.xlu0 %968
        %970 = vadd.xlane.f32.xlu0 %v939
        %v971 = vpop.xlane.xlu0 %970
        %972 = vadd.xlane.f32.xlu0 %v941
        %v973 = vpop.xlane.xlu0 %972
        %974 = vadd.xlane.f32.xlu0 %v943
        %v975 = vpop.xlane.xlu0 %974
        %976 = vadd.xlane.f32.xlu0 %v945
        %v977 = vpop.xlane.xlu0 %976
        %v978 = vlog2.pop %v947
        %v979 = vmul.f32 %v978, 0.6931472
        %v980 = vlog2.pop %v949
        %v981 = vmul.f32 %v980, 0.6931472
        %v982 = vlog2.pop %v951
        %v983 = vmul.f32 %v982, 0.6931472
        %v984 = vlog2.pop %v953
        %v985 = vmul.f32 %v984, 0.6931472
        %v986 = vlog2.pop %v955
        %v987 = vmul.f32 %v986, 0.6931472
        %v988 = vlog2.pop %v957
        %v989 = vmul.f32 %v988, 0.6931472
        %v990 = vlog2.pop %v959
        %v991 = vmul.f32 %v990, 0.6931472
        %v992 = vlog2.pop %v961
        %v993 = vmul.f32 %v992, 0.6931472
        %v994 = vlog2.pop %v963
        %v995 = vmul.f32 %v994, 0.6931472
        %v996 = vlog2.pop %v965
        %v997 = vmul.f32 %v996, 0.6931472
        %v998 = vlog2.pop %v967
        %v999 = vmul.f32 %v998, 0.6931472
        %v1000 = vlog2.pop %v969
        %v1001 = vmul.f32 %v1000, 0.6931472
        %v1002 = vlog2.pop %v971
        %v1003 = vmul.f32 %v1002, 0.6931472
        %v1004 = vlog2.pop %v973
        %v1005 = vmul.f32 %v1004, 0.6931472
        %v1006 = vlog2.pop %v975
        %v1007 = vmul.f32 %v1006, 0.6931472
        %v1008 = vlog2.pop %v977
        %v1009 = vmul.f32 %v1008, 0.6931472
        %v1010 = vsub.f32 %v898, %v979
        %v1011 = vsub.f32 %v899, %v981
        %v1012 = vsub.f32 %v900, %v983
        %v1013 = vsub.f32 %v901, %v985
        %v1014 = vsub.f32 %v902, %v987
        %v1015 = vsub.f32 %v903, %v989
        %v1016 = vsub.f32 %v904, %v991
        %v1017 = vsub.f32 %v905, %v993
        %v1018 = vsub.f32 %v906, %v995
        %v1019 = vsub.f32 %v907, %v997
        %v1020 = vsub.f32 %v908, %v999
        %v1021 = vsub.f32 %v909, %v1001
        %v1022 = vsub.f32 %v910, %v1003
        %v1023 = vsub.f32 %v911, %v1005
        %v1024 = vsub.f32 %v912, %v1007
        %v1025 = vsub.f32 %v913, %v1009
        %1026 = vst [vmem:[%s272] sm:$0xff] %v1010
        %1027 = vst [vmem:[%s272 + $0x8] sm:$0xff] %v1011
        %1028 = vst [vmem:[%s272 + $0x10] sm:$0xff] %v1012
        %1029 = vst [vmem:[%s272 + $0x18] sm:$0xff] %v1013
        %1030 = vst [vmem:[%s272 + $0x20] sm:$0xff] %v1014
        %1031 = vst [vmem:[%s272 + $0x28] sm:$0xff] %v1015
        %1032 = vst [vmem:[%s272 + $0x30] sm:$0xff] %v1016
        %1033 = vst [vmem:[%s272 + $0x38] sm:$0xff] %v1017
        %1034 = vst [vmem:[%s272 + $0x40] sm:$0xff] %v1018
        %1035 = vst [vmem:[%s272 + $0x48] sm:$0xff] %v1019
        %1036 = vst [vmem:[%s272 + $0x50] sm:$0xff] %v1020
        %1037 = vst [vmem:[%s272 + $0x58] sm:$0xff] %v1021
        %1038 = vst [vmem:[%s272 + $0x60] sm:$0xff] %v1022
        %1039 = vst [vmem:[%s272 + $0x68] sm:$0xff] %v1023
        %1040 = vst [vmem:[%s272 + $0x70] sm:$0xff] %v1024
        %1041 = vst [vmem:[%s272 + $0x78] sm:$0xff] %v1025
        %s1042 = sand.u32 %s181, 1
        %s1043 = scalar_lea.sflag [#allocation3], %s1042
        %s1044 = sand.u32 %s181, 1
        %s1045 = smul.addr %s1044, 128
        %s1046 = scalar_lea.vmem [#allocation2], %s1045
        // Predicated region
        $region49: #{tpu_custom_call.1} parent=47 // pred_check
          %p1047 = pneg %p191
        $region50: #{tpu_custom_call.1} parent=47 // pred_check_branch
          %1049 = sbr.rel (%p1047) target = $region52
        $region51: #{tpu_custom_call.1} parent=47 // pred_region
          %s1050 = smul.u32 16, %s21
          %s1052 = ssub.s32 2048, 2048
          %1053 = vsyncadd %s1043, %s1052
          %s1054 = smul.addr %s1050, 128
          %s1055 = scalar_lea.hbm %s7, %s1054
          %s1056 = sshll.u32 %s1046, 4
          %s1057 = int_to_ptr.vmem [resolvable:$true] %s1056
          %1062 = dma.vmem_to_hbm [thread:$0]  %s1057, 2048, %s1055, %s1043, 128, 128, 8
        $region52: #{tpu_custom_call.1} parent=47 // pred_fallthru
          _
      $region48: #{tpu_custom_call.1} parent=5 // pred_fallthru
        _
      %p1063 = scmp.le.s32.totalorder 2, %s16
      // Predicated region
      $region53: #{tpu_custom_call.1} parent=5 // pred_check
        %p1064 = pneg %p1063
      $region54: #{tpu_custom_call.1} parent=5 // pred_check_branch
        %1066 = sbr.rel (%p1064) target = $region56
      $region55: #{tpu_custom_call.1} parent=5 // pred_region
        %s1067 = ssub.s32 %s16, 2
        // Predicated region
        $region57: #{tpu_custom_call.1} parent=55 // pred_check
          %p1068 = pneg %p197
        $region58: #{tpu_custom_call.1} parent=55 // pred_check_branch
          %1070 = sbr.rel (%p1068) target = $region60
        $region59: #{tpu_custom_call.1} parent=55 // pred_region
          %s1071 = sand.u32 %s182, 1
          %s1072 = scalar_lea.sflag [#allocation3], %s1071
          %s1073 = sand.u32 %s182, 1
          %s1074 = smul.addr %s1073, 128
          %s1075 = scalar_lea.vmem [#allocation2], %s1074
          %1076 = dma.done %s1072, 2048
        $region60: #{tpu_custom_call.1} parent=55 // pred_fallthru
          _
      $region56: #{tpu_custom_call.1} parent=5 // pred_fallthru
        _
    $region6: #{tpu_custom_call.1} parent=1 // loop_footer
      %s20 = sadd.s32 1, %s16
    $region7: #{tpu_custom_call.1} parent=1 // loop_footer_branch
      %15 = sbr.rel target = $region3
    $region8: #{tpu_custom_call.1} parent=1 // loop_exit
      _
    %1077 = vsyncpa [#allocation3], 1
    %s1078 = scalar_lea.sflag [#allocation3], 1
    %1079 = vsyncpa %s1078, 1

</llo_original>
